<compile_context>
chip_gen: v7x
topology: tpu7x:2x2x1
jax: 0.10.0
libtpu: 0.0.40
codegen_flags: <defaults>
</compile_context>

<pallas_src>
import jax
import jax.numpy as jnp
from jax.experimental import pallas as pl
from jax.experimental.pallas import tpu as pltpu

HEADS = 8
DIM_HEAD = 16
INNER = HEADS * DIM_HEAD          # 128
EXPANDED = DIM_HEAD * INNER       # 2048 (expanded k/v lane width)
SCALE = DIM_HEAD ** (-0.5)
BN_EPS = 1e-5
# The 16x-wider expanded k/v projection weights only pay off while i_dim is
# small; above this the compact path (in-kernel selection matmul) wins.
EXPAND_MAX_IDIM = 128


# ----------------------------- kernel bodies ------------------------------

def _attend(q, ke, ve):
    """softmax_j(q .* k_j)-weighted sum of v on 128-lane head-major tiles.

    q  : (TB, 128)  f32, lane = h*16 + i   (attention scale pre-folded)
    ke : (TB, 2048) f32, lane j*128 + h*16 + i holds k[b, h, j]
    ve : (TB, 2048) f32, same layout for v

    Two passes over j; sim_j = q * ke_j is recomputed in the second pass so
    only a couple of (TB, 128) tiles are live at once (no vreg spills) and
    the EUP does exactly one exp per j.  All slices are 128-aligned lane
    blocks (pure vreg selection, no relayout).
    """
    m = q * ke[:, :INNER]
    for j in range(1, DIM_HEAD):
        m = jnp.maximum(m, q * ke[:, j * INNER:(j + 1) * INNER])

    z = jnp.zeros_like(m)     # softmax denominator
    n = jnp.zeros_like(m)     # softmax-weighted sum of v
    for j in range(DIM_HEAD):
        # TODO(synk): a bf16 exp path (~2x EUP on v6e/v7x) is possible; kept
        # f32 so one kernel stays accurate enough on v5e as well.
        p = jnp.exp(q * ke[:, j * INNER:(j + 1) * INNER] - m)
        z = z + p
        n = n + p * ve[:, j * INNER:(j + 1) * INNER]
    return n * pl.reciprocal(z, approx=True)


def _head_and_out(out, w2_ref, b2_ref, o_ref):
    # to_out with eval-mode BatchNorm folded into w2/b2, then tanh (dropout=id).
    y = jnp.dot(out.astype(jnp.bfloat16), w2_ref[...],
                preferred_element_type=jnp.float32) + b2_ref[...]
    # o_dim=16 -> masked stores; lane-dense only if deployed with o_dim % 128 == 0.
    o_ref[...] = jnp.tanh(y)


def abtd_kernel_expanded(x_ref, w_ref, w2_ref, b2_ref, o_ref):
    """i_dim <= EXPAND_MAX_IDIM: k/v lane replication folded into the weights."""
    xb = x_ref[...].astype(jnp.bfloat16)
    # Single MXU weight [wq*scale | wk_expanded | wv_expanded], one matmul.
    qkv = jnp.dot(xb, w_ref[...], preferred_element_type=jnp.float32)
    q = qkv[:, :INNER]
    ke = qkv[:, INNER:INNER + EXPANDED]
    ve = qkv[:, INNER + EXPANDED:]
    _head_and_out(_attend(q, ke, ve), w2_ref, b2_ref, o_ref)


def abtd_kernel_compact(x_ref, w_ref, sel_ref, w2_ref, b2_ref, o_ref):
    """i_dim > EXPAND_MAX_IDIM: project k/v to 128 lanes, replicate in-kernel."""
    xb = x_ref[...].astype(jnp.bfloat16)
    qkv = jnp.dot(xb, w_ref[...], preferred_element_type=jnp.float32)   # (TB, 384)
    q = qkv[:, :INNER]
    k = qkv[:, INNER:2 * INNER]
    v = qkv[:, 2 * INNER:]
    # Constant 0/1 selection matmul replicates k[b,h,j] / v[b,h,j] across the
    # head's 16 lanes on the MXU (avoids 16x-wider projection weights).
    ke = jnp.dot(k.astype(jnp.bfloat16), sel_ref[...],
                 preferred_element_type=jnp.float32)                    # (TB, 2048)
    ve = jnp.dot(v.astype(jnp.bfloat16), sel_ref[...],
                 preferred_element_type=jnp.float32)
    _head_and_out(_attend(q, ke, ve), w2_ref, b2_ref, o_ref)


# --------------------------- host-side folding ----------------------------

def _fold_params(w_qkv, w_out, b_out, gamma, beta, mean, var, *, expand):
    """One-time constant folding of static inference parameters (bf16 MXU ops)."""
    i_dim = w_qkv.shape[0]
    o_dim = w_out.shape[1]
    wq = w_qkv[:, :INNER] * SCALE                 # fold attention scale into q
    wk = w_qkv[:, INNER:2 * INNER]
    wv = w_qkv[:, 2 * INNER:]
    if expand:
        def ex(w):
            # (i_dim, h*16+j) -> columns (j, h, i): col j*128 + h*16 + i = w[f, h, j]
            w = w.reshape(i_dim, HEADS, DIM_HEAD)
            w = jnp.transpose(w, (0, 2, 1))[:, :, :, None]
            w = jnp.broadcast_to(w, (i_dim, DIM_HEAD, HEADS, DIM_HEAD))
            return w.reshape(i_dim, EXPANDED)
        w_all = jnp.concatenate([wq, ex(wk), ex(wv)], axis=1)   # (i_dim, 4224)
    else:
        w_all = jnp.concatenate([wq, wk, wv], axis=1)           # (i_dim, 384)

    # Eval-mode BatchNorm affine folded into to_out.
    s = gamma * jax.lax.rsqrt(var + BN_EPS)
    w2 = w_out * s[None, :]
    b2 = ((b_out - mean) * s + beta).reshape(1, o_dim)
    return (w_all.astype(jnp.bfloat16),
            w2.astype(jnp.bfloat16),
            b2.astype(jnp.float32))


def _selection_matrix(dtype):
    """(128, 2048) 0/1 matrix: row h*16+j -> columns j*128 + h*16 + i, all i."""
    rows = jnp.arange(INNER)
    rh, rj = rows // DIM_HEAD, rows % DIM_HEAD
    cols = jnp.arange(EXPANDED)
    cj, ch = cols // INNER, (cols % INNER) // DIM_HEAD
    sel = (rj[:, None] == cj[None, :]) & (rh[:, None] == ch[None, :])
    return sel.astype(dtype)


def _round_up(n, m):
    return -(-n // m) * m


def _batch_tile(B, block_b):
    if B <= 8:
        return B
    # >= 2 grid steps when possible (v7x dual-TensorCore sharding of the
    # "parallel" axis); tile rows a multiple of 8 (sublane tiling).
    return min(_round_up(block_b, 8), _round_up(pl.cdiv(B, 2), 8))


# ------------------------------ entry point -------------------------------

def abtd_forward(x, w_qkv, w_out, b_out, gamma, beta, mean, var, *, block_b=512):
    """Eval-mode ABTD forward.  x: (B, i_dim) float; returns (B, o_dim) f32."""
    B, i_dim = x.shape
    o_dim = w_out.shape[1]
    expand = i_dim <= EXPAND_MAX_IDIM

    w_all, w2, b2 = _fold_params(w_qkv, w_out, b_out, gamma, beta, mean, var,
                                 expand=expand)

    tb = _batch_tile(B, block_b)
    grid = (pl.cdiv(B, tb),)

    def resident(a):
        # Grid-invariant operand: constant index map, single buffer (no
        # double-buffering -> halved VMEM footprint for the weights).
        return pl.BlockSpec(a.shape, lambda i: (0,) * a.ndim,
                            pipeline_mode=pl.Buffered(1))

    if expand:
        kernel = abtd_kernel_expanded
        operands = [x, w_all, w2, b2]
        in_specs = [pl.BlockSpec((tb, i_dim), lambda i: (i, 0)),
                    resident(w_all), resident(w2), resident(b2)]
        w_bytes = int(w_all.size) * 2
    else:
        sel = _selection_matrix(jnp.bfloat16)
        kernel = abtd_kernel_compact
        operands = [x, w_all, sel, w2, b2]
        in_specs = [pl.BlockSpec((tb, i_dim), lambda i: (i, 0)),
                    resident(w_all), resident(sel), resident(w2), resident(b2)]
        w_bytes = (int(w_all.size) + int(sel.size)) * 2

    mm_flops = 2 * B * i_dim * int(w_all.shape[1]) + 2 * B * INNER * o_dim
    if not expand:
        mm_flops += 2 * 2 * B * INNER * EXPANDED        # the two selection matmuls
    cost = pl.CostEstimate(
        flops=mm_flops + 5 * B * DIM_HEAD * INNER,
        transcendentals=B * (DIM_HEAD * INNER + INNER + o_dim),
        bytes_accessed=(B * i_dim * x.dtype.itemsize + w_bytes
                        + 2 * INNER * o_dim + 4 * o_dim + 4 * B * o_dim),
    )

    return pl.pallas_call(
        kernel,
        out_shape=jax.ShapeDtypeStruct((B, o_dim), jnp.float32),
        grid=grid,
        in_specs=in_specs,
        out_specs=pl.BlockSpec((tb, o_dim), lambda i: (i, 0)),
        compiler_params=pltpu.CompilerParams(
            dimension_semantics=("parallel",),
            vmem_limit_bytes=48 << 20),
        cost_estimate=cost,
    )(*operands)


# ------------------------------- reference --------------------------------

def abtd_reference(x, w_qkv, w_out, b_out, gamma, beta, mean, var):
    """Pure-JAX f32 reference mirroring the PyTorch forward (eval mode)."""
    B = x.shape[0]
    qkv = x @ w_qkv
    q, k, v = jnp.split(qkv, 3, axis=-1)
    q = q.reshape(B, HEADS, DIM_HEAD)
    k = k.reshape(B, HEADS, DIM_HEAD)
    v = v.reshape(B, HEADS, DIM_HEAD)
    sim = jnp.einsum('bhi,bhj->bhij', q, k) * SCALE
    attn = jax.nn.softmax(sim, axis=-1)
    out = jnp.einsum('bhij,bhj->bhi', attn, v).reshape(B, INNER)
    y = out @ w_out + b_out
    y = (y - mean) / jnp.sqrt(var + BN_EPS) * gamma + beta
    return jnp.tanh(y)


if __name__ == "__main__":
    key = jax.random.PRNGKey(0)

    def make_case(k, B, i_dim, o_dim):
        ks = jax.random.split(k, 8)
        x      = jax.random.normal(ks[0], (B, i_dim), jnp.float32)
        # Linear weights stored as (in, out); deterministic synthetic init.
        w_qkv  = jax.random.normal(ks[1], (i_dim, 3 * INNER), jnp.float32) * (i_dim ** -0.5)
        w_out  = jax.random.normal(ks[2], (INNER, o_dim), jnp.float32) * (INNER ** -0.5)
        b_out  = jax.random.normal(ks[3], (o_dim,), jnp.float32) * 0.1
        gamma  = 1.0 + jax.random.normal(ks[4], (o_dim,), jnp.float32) * 0.1
        beta   = jax.random.normal(ks[5], (o_dim,), jnp.float32) * 0.1
        mean   = jax.random.normal(ks[6], (o_dim,), jnp.float32) * 0.1
        var    = jax.random.uniform(ks[7], (o_dim,), jnp.float32, minval=0.5, maxval=1.5)
        return (x, w_qkv, w_out, b_out, gamma, beta, mean, var)

    k1, k2 = jax.random.split(key)
    # Case 1: expanded-weight path (i_dim <= 128), single grid step.
    case1 = make_case(k1, B=8, i_dim=32, o_dim=16)
    # Case 2: compact path (i_dim > 128), 2 grid steps, ragged last batch block.
    case2 = make_case(k2, B=20, i_dim=256, o_dim=16)

    for args in (case1, case2):
        out = jax.block_until_ready(abtd_forward(*args))
        ref = abtd_reference(*args)
        assert out.shape == ref.shape
        assert bool(jnp.all(jnp.isfinite(out)))
        # Tolerance covers bf16 MXU operands + the approximate EUP reciprocal.
        err = float(jnp.max(jnp.abs(out - ref)))
        assert bool(jnp.allclose(out, ref, atol=2e-2, rtol=2e-2)), (
            f"mismatch vs reference: max abs err {err}")

    print("KERNEL_OK")
</pallas_src>

<mosaic_0001>
module attributes {stable_mosaic.version = 11 : i64} {
  func.func @abtd_kernel_expanded(%arg0: i32, %arg1: memref<8x32xf32, #tpu.memory_space<vmem>>, %arg2: memref<32x4224xbf16, #tpu.memory_space<vmem>>, %arg3: memref<128x16xbf16, #tpu.memory_space<vmem>>, %arg4: memref<1x16xf32, #tpu.memory_space<vmem>>, %arg5: memref<8x16xf32, #tpu.memory_space<vmem>>) attributes {dimension_semantics = [#tpu.dimension_semantics<parallel>], iteration_bounds = array<i64: 1>, scalar_prefetch = 0 : i64, scratch_operands = 0 : i64, tpu.core_type = #tpu.core_type<tc>, window_params = [{transform_indices = @transform_0, window_bounds = array<i64: 8, 32>}, {pipeline_mode = #tpu.pipeline_mode<synchronous>, transform_indices = @transform_1, window_bounds = array<i64: 32, 4224>}, {pipeline_mode = #tpu.pipeline_mode<synchronous>, transform_indices = @transform_2, window_bounds = array<i64: 128, 16>}, {pipeline_mode = #tpu.pipeline_mode<synchronous>, transform_indices = @transform_3, window_bounds = array<i64: 1, 16>}, {transform_indices = @transform_4, window_bounds = array<i64: 8, 16>}]} {
    %c0 = arith.constant 0 : index
    %c0_0 = arith.constant 0 : index
    %0 = vector.load %arg1[%c0, %c0_0] : memref<8x32xf32, #tpu.memory_space<vmem>>, vector<8x32xf32>
    %1 = arith.truncf %0 : vector<8x32xf32> to vector<8x32xbf16>
    %c0_1 = arith.constant 0 : index
    %c0_2 = arith.constant 0 : index
    %2 = vector.load %arg2[%c0_1, %c0_2] : memref<32x4224xbf16, #tpu.memory_space<vmem>>, vector<32x4224xbf16>
    %cst = arith.constant dense<0.000000e+00> : vector<8x4224xf32>
    %3 = tpu.matmul %1, %2, %cst {dimension_numbers = #tpu.dot_dimension_numbers<[1], [0], [0], [1], [0, 0, 1, 1], [], []>} : vector<8x32xbf16>, vector<32x4224xbf16>, vector<8x4224xf32> -> vector<8x4224xf32>
    %4 = vector.extract_strided_slice %3 {offsets = [0, 0], sizes = [8, 128], strides = [1, 1]} : vector<8x4224xf32> to vector<8x128xf32>
    %5 = vector.extract_strided_slice %3 {offsets = [0, 128], sizes = [8, 2048], strides = [1, 1]} : vector<8x4224xf32> to vector<8x2048xf32>
    %6 = vector.extract_strided_slice %3 {offsets = [0, 2176], sizes = [8, 2048], strides = [1, 1]} : vector<8x4224xf32> to vector<8x2048xf32>
    %7 = vector.extract_strided_slice %5 {offsets = [0, 0], sizes = [8, 128], strides = [1, 1]} : vector<8x2048xf32> to vector<8x128xf32>
    %8 = arith.mulf %4, %7 : vector<8x128xf32>
    %9 = vector.extract_strided_slice %5 {offsets = [0, 128], sizes = [8, 128], strides = [1, 1]} : vector<8x2048xf32> to vector<8x128xf32>
    %10 = arith.mulf %4, %9 : vector<8x128xf32>
    %11 = arith.maximumf %8, %10 : vector<8x128xf32>
    %12 = vector.extract_strided_slice %5 {offsets = [0, 256], sizes = [8, 128], strides = [1, 1]} : vector<8x2048xf32> to vector<8x128xf32>
    %13 = arith.mulf %4, %12 : vector<8x128xf32>
    %14 = arith.maximumf %11, %13 : vector<8x128xf32>
    %15 = vector.extract_strided_slice %5 {offsets = [0, 384], sizes = [8, 128], strides = [1, 1]} : vector<8x2048xf32> to vector<8x128xf32>
    %16 = arith.mulf %4, %15 : vector<8x128xf32>
    %17 = arith.maximumf %14, %16 : vector<8x128xf32>
    %18 = vector.extract_strided_slice %5 {offsets = [0, 512], sizes = [8, 128], strides = [1, 1]} : vector<8x2048xf32> to vector<8x128xf32>
    %19 = arith.mulf %4, %18 : vector<8x128xf32>
    %20 = arith.maximumf %17, %19 : vector<8x128xf32>
    %21 = vector.extract_strided_slice %5 {offsets = [0, 640], sizes = [8, 128], strides = [1, 1]} : vector<8x2048xf32> to vector<8x128xf32>
    %22 = arith.mulf %4, %21 : vector<8x128xf32>
    %23 = arith.maximumf %20, %22 : vector<8x128xf32>
    %24 = vector.extract_strided_slice %5 {offsets = [0, 768], sizes = [8, 128], strides = [1, 1]} : vector<8x2048xf32> to vector<8x128xf32>
    %25 = arith.mulf %4, %24 : vector<8x128xf32>
    %26 = arith.maximumf %23, %25 : vector<8x128xf32>
    %27 = vector.extract_strided_slice %5 {offsets = [0, 896], sizes = [8, 128], strides = [1, 1]} : vector<8x2048xf32> to vector<8x128xf32>
    %28 = arith.mulf %4, %27 : vector<8x128xf32>
    %29 = arith.maximumf %26, %28 : vector<8x128xf32>
    %30 = vector.extract_strided_slice %5 {offsets = [0, 1024], sizes = [8, 128], strides = [1, 1]} : vector<8x2048xf32> to vector<8x128xf32>
    %31 = arith.mulf %4, %30 : vector<8x128xf32>
    %32 = arith.maximumf %29, %31 : vector<8x128xf32>
    %33 = vector.extract_strided_slice %5 {offsets = [0, 1152], sizes = [8, 128], strides = [1, 1]} : vector<8x2048xf32> to vector<8x128xf32>
    %34 = arith.mulf %4, %33 : vector<8x128xf32>
    %35 = arith.maximumf %32, %34 : vector<8x128xf32>
    %36 = vector.extract_strided_slice %5 {offsets = [0, 1280], sizes = [8, 128], strides = [1, 1]} : vector<8x2048xf32> to vector<8x128xf32>
    %37 = arith.mulf %4, %36 : vector<8x128xf32>
    %38 = arith.maximumf %35, %37 : vector<8x128xf32>
    %39 = vector.extract_strided_slice %5 {offsets = [0, 1408], sizes = [8, 128], strides = [1, 1]} : vector<8x2048xf32> to vector<8x128xf32>
    %40 = arith.mulf %4, %39 : vector<8x128xf32>
    %41 = arith.maximumf %38, %40 : vector<8x128xf32>
    %42 = vector.extract_strided_slice %5 {offsets = [0, 1536], sizes = [8, 128], strides = [1, 1]} : vector<8x2048xf32> to vector<8x128xf32>
    %43 = arith.mulf %4, %42 : vector<8x128xf32>
    %44 = arith.maximumf %41, %43 : vector<8x128xf32>
    %45 = vector.extract_strided_slice %5 {offsets = [0, 1664], sizes = [8, 128], strides = [1, 1]} : vector<8x2048xf32> to vector<8x128xf32>
    %46 = arith.mulf %4, %45 : vector<8x128xf32>
    %47 = arith.maximumf %44, %46 : vector<8x128xf32>
    %48 = vector.extract_strided_slice %5 {offsets = [0, 1792], sizes = [8, 128], strides = [1, 1]} : vector<8x2048xf32> to vector<8x128xf32>
    %49 = arith.mulf %4, %48 : vector<8x128xf32>
    %50 = arith.maximumf %47, %49 : vector<8x128xf32>
    %51 = vector.extract_strided_slice %5 {offsets = [0, 1920], sizes = [8, 128], strides = [1, 1]} : vector<8x2048xf32> to vector<8x128xf32>
    %52 = arith.mulf %4, %51 : vector<8x128xf32>
    %53 = arith.maximumf %50, %52 : vector<8x128xf32>
    %cst_3 = arith.constant 0.000000e+00 : f32
    %54 = vector.broadcast %cst_3 : f32 to vector<8x128xf32>
    %cst_4 = arith.constant 0.000000e+00 : f32
    %55 = vector.broadcast %cst_4 : f32 to vector<8x128xf32>
    %56 = vector.extract_strided_slice %5 {offsets = [0, 0], sizes = [8, 128], strides = [1, 1]} : vector<8x2048xf32> to vector<8x128xf32>
    %57 = arith.mulf %4, %56 : vector<8x128xf32>
    %58 = arith.subf %57, %53 : vector<8x128xf32>
    %59 = math.exp %58 : vector<8x128xf32>
    %60 = arith.addf %54, %59 : vector<8x128xf32>
    %61 = vector.extract_strided_slice %6 {offsets = [0, 0], sizes = [8, 128], strides = [1, 1]} : vector<8x2048xf32> to vector<8x128xf32>
    %62 = arith.mulf %59, %61 : vector<8x128xf32>
    %63 = arith.addf %55, %62 : vector<8x128xf32>
    %64 = vector.extract_strided_slice %5 {offsets = [0, 128], sizes = [8, 128], strides = [1, 1]} : vector<8x2048xf32> to vector<8x128xf32>
    %65 = arith.mulf %4, %64 : vector<8x128xf32>
    %66 = arith.subf %65, %53 : vector<8x128xf32>
    %67 = math.exp %66 : vector<8x128xf32>
    %68 = arith.addf %60, %67 : vector<8x128xf32>
    %69 = vector.extract_strided_slice %6 {offsets = [0, 128], sizes = [8, 128], strides = [1, 1]} : vector<8x2048xf32> to vector<8x128xf32>
    %70 = arith.mulf %67, %69 : vector<8x128xf32>
    %71 = arith.addf %63, %70 : vector<8x128xf32>
    %72 = vector.extract_strided_slice %5 {offsets = [0, 256], sizes = [8, 128], strides = [1, 1]} : vector<8x2048xf32> to vector<8x128xf32>
    %73 = arith.mulf %4, %72 : vector<8x128xf32>
    %74 = arith.subf %73, %53 : vector<8x128xf32>
    %75 = math.exp %74 : vector<8x128xf32>
    %76 = arith.addf %68, %75 : vector<8x128xf32>
    %77 = vector.extract_strided_slice %6 {offsets = [0, 256], sizes = [8, 128], strides = [1, 1]} : vector<8x2048xf32> to vector<8x128xf32>
    %78 = arith.mulf %75, %77 : vector<8x128xf32>
    %79 = arith.addf %71, %78 : vector<8x128xf32>
    %80 = vector.extract_strided_slice %5 {offsets = [0, 384], sizes = [8, 128], strides = [1, 1]} : vector<8x2048xf32> to vector<8x128xf32>
    %81 = arith.mulf %4, %80 : vector<8x128xf32>
    %82 = arith.subf %81, %53 : vector<8x128xf32>
    %83 = math.exp %82 : vector<8x128xf32>
    %84 = arith.addf %76, %83 : vector<8x128xf32>
    %85 = vector.extract_strided_slice %6 {offsets = [0, 384], sizes = [8, 128], strides = [1, 1]} : vector<8x2048xf32> to vector<8x128xf32>
    %86 = arith.mulf %83, %85 : vector<8x128xf32>
    %87 = arith.addf %79, %86 : vector<8x128xf32>
    %88 = vector.extract_strided_slice %5 {offsets = [0, 512], sizes = [8, 128], strides = [1, 1]} : vector<8x2048xf32> to vector<8x128xf32>
    %89 = arith.mulf %4, %88 : vector<8x128xf32>
    %90 = arith.subf %89, %53 : vector<8x128xf32>
    %91 = math.exp %90 : vector<8x128xf32>
    %92 = arith.addf %84, %91 : vector<8x128xf32>
    %93 = vector.extract_strided_slice %6 {offsets = [0, 512], sizes = [8, 128], strides = [1, 1]} : vector<8x2048xf32> to vector<8x128xf32>
    %94 = arith.mulf %91, %93 : vector<8x128xf32>
    %95 = arith.addf %87, %94 : vector<8x128xf32>
    %96 = vector.extract_strided_slice %5 {offsets = [0, 640], sizes = [8, 128], strides = [1, 1]} : vector<8x2048xf32> to vector<8x128xf32>
    %97 = arith.mulf %4, %96 : vector<8x128xf32>
    %98 = arith.subf %97, %53 : vector<8x128xf32>
    %99 = math.exp %98 : vector<8x128xf32>
    %100 = arith.addf %92, %99 : vector<8x128xf32>
    %101 = vector.extract_strided_slice %6 {offsets = [0, 640], sizes = [8, 128], strides = [1, 1]} : vector<8x2048xf32> to vector<8x128xf32>
    %102 = arith.mulf %99, %101 : vector<8x128xf32>
    %103 = arith.addf %95, %102 : vector<8x128xf32>
    %104 = vector.extract_strided_slice %5 {offsets = [0, 768], sizes = [8, 128], strides = [1, 1]} : vector<8x2048xf32> to vector<8x128xf32>
    %105 = arith.mulf %4, %104 : vector<8x128xf32>
    %106 = arith.subf %105, %53 : vector<8x128xf32>
    %107 = math.exp %106 : vector<8x128xf32>
    %108 = arith.addf %100, %107 : vector<8x128xf32>
    %109 = vector.extract_strided_slice %6 {offsets = [0, 768], sizes = [8, 128], strides = [1, 1]} : vector<8x2048xf32> to vector<8x128xf32>
    %110 = arith.mulf %107, %109 : vector<8x128xf32>
    %111 = arith.addf %103, %110 : vector<8x128xf32>
    %112 = vector.extract_strided_slice %5 {offsets = [0, 896], sizes = [8, 128], strides = [1, 1]} : vector<8x2048xf32> to vector<8x128xf32>
    %113 = arith.mulf %4, %112 : vector<8x128xf32>
    %114 = arith.subf %113, %53 : vector<8x128xf32>
    %115 = math.exp %114 : vector<8x128xf32>
    %116 = arith.addf %108, %115 : vector<8x128xf32>
    %117 = vector.extract_strided_slice %6 {offsets = [0, 896], sizes = [8, 128], strides = [1, 1]} : vector<8x2048xf32> to vector<8x128xf32>
    %118 = arith.mulf %115, %117 : vector<8x128xf32>
    %119 = arith.addf %111, %118 : vector<8x128xf32>
    %120 = vector.extract_strided_slice %5 {offsets = [0, 1024], sizes = [8, 128], strides = [1, 1]} : vector<8x2048xf32> to vector<8x128xf32>
    %121 = arith.mulf %4, %120 : vector<8x128xf32>
    %122 = arith.subf %121, %53 : vector<8x128xf32>
    %123 = math.exp %122 : vector<8x128xf32>
    %124 = arith.addf %116, %123 : vector<8x128xf32>
    %125 = vector.extract_strided_slice %6 {offsets = [0, 1024], sizes = [8, 128], strides = [1, 1]} : vector<8x2048xf32> to vector<8x128xf32>
    %126 = arith.mulf %123, %125 : vector<8x128xf32>
    %127 = arith.addf %119, %126 : vector<8x128xf32>
    %128 = vector.extract_strided_slice %5 {offsets = [0, 1152], sizes = [8, 128], strides = [1, 1]} : vector<8x2048xf32> to vector<8x128xf32>
    %129 = arith.mulf %4, %128 : vector<8x128xf32>
    %130 = arith.subf %129, %53 : vector<8x128xf32>
    %131 = math.exp %130 : vector<8x128xf32>
    %132 = arith.addf %124, %131 : vector<8x128xf32>
    %133 = vector.extract_strided_slice %6 {offsets = [0, 1152], sizes = [8, 128], strides = [1, 1]} : vector<8x2048xf32> to vector<8x128xf32>
    %134 = arith.mulf %131, %133 : vector<8x128xf32>
    %135 = arith.addf %127, %134 : vector<8x128xf32>
    %136 = vector.extract_strided_slice %5 {offsets = [0, 1280], sizes = [8, 128], strides = [1, 1]} : vector<8x2048xf32> to vector<8x128xf32>
    %137 = arith.mulf %4, %136 : vector<8x128xf32>
    %138 = arith.subf %137, %53 : vector<8x128xf32>
    %139 = math.exp %138 : vector<8x128xf32>
    %140 = arith.addf %132, %139 : vector<8x128xf32>
    %141 = vector.extract_strided_slice %6 {offsets = [0, 1280], sizes = [8, 128], strides = [1, 1]} : vector<8x2048xf32> to vector<8x128xf32>
    %142 = arith.mulf %139, %141 : vector<8x128xf32>
    %143 = arith.addf %135, %142 : vector<8x128xf32>
    %144 = vector.extract_strided_slice %5 {offsets = [0, 1408], sizes = [8, 128], strides = [1, 1]} : vector<8x2048xf32> to vector<8x128xf32>
    %145 = arith.mulf %4, %144 : vector<8x128xf32>
    %146 = arith.subf %145, %53 : vector<8x128xf32>
    %147 = math.exp %146 : vector<8x128xf32>
    %148 = arith.addf %140, %147 : vector<8x128xf32>
    %149 = vector.extract_strided_slice %6 {offsets = [0, 1408], sizes = [8, 128], strides = [1, 1]} : vector<8x2048xf32> to vector<8x128xf32>
    %150 = arith.mulf %147, %149 : vector<8x128xf32>
    %151 = arith.addf %143, %150 : vector<8x128xf32>
    %152 = vector.extract_strided_slice %5 {offsets = [0, 1536], sizes = [8, 128], strides = [1, 1]} : vector<8x2048xf32> to vector<8x128xf32>
    %153 = arith.mulf %4, %152 : vector<8x128xf32>
    %154 = arith.subf %153, %53 : vector<8x128xf32>
    %155 = math.exp %154 : vector<8x128xf32>
    %156 = arith.addf %148, %155 : vector<8x128xf32>
    %157 = vector.extract_strided_slice %6 {offsets = [0, 1536], sizes = [8, 128], strides = [1, 1]} : vector<8x2048xf32> to vector<8x128xf32>
    %158 = arith.mulf %155, %157 : vector<8x128xf32>
    %159 = arith.addf %151, %158 : vector<8x128xf32>
    %160 = vector.extract_strided_slice %5 {offsets = [0, 1664], sizes = [8, 128], strides = [1, 1]} : vector<8x2048xf32> to vector<8x128xf32>
    %161 = arith.mulf %4, %160 : vector<8x128xf32>
    %162 = arith.subf %161, %53 : vector<8x128xf32>
    %163 = math.exp %162 : vector<8x128xf32>
    %164 = arith.addf %156, %163 : vector<8x128xf32>
    %165 = vector.extract_strided_slice %6 {offsets = [0, 1664], sizes = [8, 128], strides = [1, 1]} : vector<8x2048xf32> to vector<8x128xf32>
    %166 = arith.mulf %163, %165 : vector<8x128xf32>
    %167 = arith.addf %159, %166 : vector<8x128xf32>
    %168 = vector.extract_strided_slice %5 {offsets = [0, 1792], sizes = [8, 128], strides = [1, 1]} : vector<8x2048xf32> to vector<8x128xf32>
    %169 = arith.mulf %4, %168 : vector<8x128xf32>
    %170 = arith.subf %169, %53 : vector<8x128xf32>
    %171 = math.exp %170 : vector<8x128xf32>
    %172 = arith.addf %164, %171 : vector<8x128xf32>
    %173 = vector.extract_strided_slice %6 {offsets = [0, 1792], sizes = [8, 128], strides = [1, 1]} : vector<8x2048xf32> to vector<8x128xf32>
    %174 = arith.mulf %171, %173 : vector<8x128xf32>
    %175 = arith.addf %167, %174 : vector<8x128xf32>
    %176 = vector.extract_strided_slice %5 {offsets = [0, 1920], sizes = [8, 128], strides = [1, 1]} : vector<8x2048xf32> to vector<8x128xf32>
    %177 = arith.mulf %4, %176 : vector<8x128xf32>
    %178 = arith.subf %177, %53 : vector<8x128xf32>
    %179 = math.exp %178 : vector<8x128xf32>
    %180 = arith.addf %172, %179 : vector<8x128xf32>
    %181 = vector.extract_strided_slice %6 {offsets = [0, 1920], sizes = [8, 128], strides = [1, 1]} : vector<8x2048xf32> to vector<8x128xf32>
    %182 = arith.mulf %179, %181 : vector<8x128xf32>
    %183 = arith.addf %175, %182 : vector<8x128xf32>
    %184 = tpu.reciprocal %180 {approx = true} : vector<8x128xf32> -> vector<8x128xf32>
    %185 = arith.mulf %183, %184 : vector<8x128xf32>
    %186 = arith.truncf %185 : vector<8x128xf32> to vector<8x128xbf16>
    %c0_5 = arith.constant 0 : index
    %c0_6 = arith.constant 0 : index
    %187 = vector.load %arg3[%c0_5, %c0_6] : memref<128x16xbf16, #tpu.memory_space<vmem>>, vector<128x16xbf16>
    %cst_7 = arith.constant dense<0.000000e+00> : vector<8x16xf32>
    %188 = tpu.matmul %186, %187, %cst_7 {dimension_numbers = #tpu.dot_dimension_numbers<[1], [0], [0], [1], [0, 0, 1, 1], [], []>} : vector<8x128xbf16>, vector<128x16xbf16>, vector<8x16xf32> -> vector<8x16xf32>
    %c0_8 = arith.constant 0 : index
    %c0_9 = arith.constant 0 : index
    %189 = vector.load %arg4[%c0_8, %c0_9] : memref<1x16xf32, #tpu.memory_space<vmem>>, vector<1x16xf32>
    %190 = vector.broadcast %189 : vector<1x16xf32> to vector<8x16xf32>
    %191 = arith.addf %188, %190 : vector<8x16xf32>
    %192 = math.tanh %191 : vector<8x16xf32>
    %c0_10 = arith.constant 0 : index
    %c0_11 = arith.constant 0 : index
    %193 = vector.load %arg5[%c0_10, %c0_11] : memref<8x16xf32, #tpu.memory_space<vmem>>, vector<8x16xf32>
    tpu.vector_store %arg5[%c0_10, %c0_11], %192 {strides = array<i32>} : memref<8x16xf32, #tpu.memory_space<vmem>>, vector<8x16xf32>,
    return
  }
  func.func @transform_0(%arg0: i32) -> (i32, i32) {
    %c0_i32 = arith.constant 0 : i32
    %c0_i32_0 = arith.constant 0 : i32
    return %arg0, %c0_i32 : i32, i32
  }
  func.func @transform_1(%arg0: i32) -> (i32, i32) {
    %c0_i32 = arith.constant 0 : i32
    %c0_i32_0 = arith.constant 0 : i32
    %c0_i32_1 = arith.constant 0 : i32
    return %c0_i32, %c0_i32_0 : i32, i32
  }
  func.func @transform_2(%arg0: i32) -> (i32, i32) {
    %c0_i32 = arith.constant 0 : i32
    %c0_i32_0 = arith.constant 0 : i32
    %c0_i32_1 = arith.constant 0 : i32
    return %c0_i32, %c0_i32_0 : i32, i32
  }
  func.func @transform_3(%arg0: i32) -> (i32, i32) {
    %c0_i32 = arith.constant 0 : i32
    %c0_i32_0 = arith.constant 0 : i32
    %c0_i32_1 = arith.constant 0 : i32
    return %c0_i32, %c0_i32_0 : i32, i32
  }
  func.func @transform_4(%arg0: i32) -> (i32, i32) {
    %c0_i32 = arith.constant 0 : i32
    %c0_i32_0 = arith.constant 0 : i32
    return %arg0, %c0_i32 : i32, i32
  }
}

</mosaic_0001>

<llo_original>
// kernel: tpu_custom_call.1
$region0: #{tpu_custom_call.1}
  #allocation0 [shape = 'u32[]', space=smem, size = 0x4, offset = 0x4, fixed_abs, tag = 'smem constant byte address 0x4 - core index']
  #allocation1 [shape = 'u32[144,128]{1,0:T(1,128)}', space=vmem, size = 0x12000, scoped, tag = 'internal scratch']
  %s0 = inlined_call_operand.vmem [shape: f32[8,32], index: 0, kind: input, shape index: {}]
  %s1 = inlined_call_operand.hbm [shape: bf16[32,4224], index: 1, kind: input, shape index: {}]
  %s2 = inlined_call_operand.vmem [shape: bf16[128,16], index: 2, kind: input, shape index: {}]
  %s3 = inlined_call_operand.vmem [shape: f32[1,16], index: 3, kind: input, shape index: {}]
  %s4 = inlined_call_operand.hbm [shape: f32[8,16], index: 4, kind: output, shape index: {}]
  %s5 = sld [smem:[#allocation0]]
  $region30: #{tpu_custom_call.1} parent=0
    _
  %s7 = ssub.s32 1, %s5
  %s8 = scalar_select 0, %s7, %s5
  $region1: #{tpu_custom_call.1} parent=0
    #allocation2 [shape = 'u8[270336]{0}', space=vmem, size = 0x42000, scoped, tag = 'input window, operand 1, single buffered']
    #allocation3 [shape = 's32[1]{0}', space=sflag, size = 0x4, scoped, tag = 'scoped memory for tpu_custom_call.1']
    #allocation4 [shape = 's32[1]{0}', space=sflag, size = 0x4, scoped, tag = 'scoped memory for tpu_custom_call.1']
    #allocation5 [shape = 'u8[4096]{0}', space=vmem, size = 0x1000, scoped, tag = 'output window, operand 0, single buffered']
    %9 = vsyncpa [#allocation3], 0
    %10 = vsyncpa [#allocation4], 0
    // Predicated region
    $region2: #{tpu_custom_call.1} parent=1 // pred_check
      _
    $region3: #{tpu_custom_call.1} parent=1 // pred_check_branch
      %12 = sbr.rel (0) target = $region5
    $region4: #{tpu_custom_call.1} parent=1 // pred_region
      _
    $region5: #{tpu_custom_call.1} parent=1 // pred_fallthru
      _
    // Predicated region
    $region6: #{tpu_custom_call.1} parent=1 // pred_check
      _
    $region7: #{tpu_custom_call.1} parent=1 // pred_check_branch
      %14 = sbr.rel (0) target = $region9
    $region8: #{tpu_custom_call.1} parent=1 // pred_region
      %s16 = ssub.s32 8448, 8448
      %17 = vsyncadd [#allocation3], %s16
      %s18 = sshll.u32 [#allocation2], 4
      %s19 = int_to_ptr.vmem [resolvable:$true] %s18
      %24 = dma.hbm_to_vmem [thread:$0]  %s1, 8448, %s19, [#allocation3], 2112, 2112, 132
    $region9: #{tpu_custom_call.1} parent=1 // pred_fallthru
      _
    // Predicated region
    $region10: #{tpu_custom_call.1} parent=1 // pred_check
      _
    $region11: #{tpu_custom_call.1} parent=1 // pred_check_branch
      %26 = sbr.rel (0) target = $region13
    $region12: #{tpu_custom_call.1} parent=1 // pred_region
      _
    $region13: #{tpu_custom_call.1} parent=1 // pred_fallthru
      _
    // Predicated region
    $region14: #{tpu_custom_call.1} parent=1 // pred_check
      _
    $region15: #{tpu_custom_call.1} parent=1 // pred_check_branch
      %28 = sbr.rel (0) target = $region17
    $region16: #{tpu_custom_call.1} parent=1 // pred_region
      _
    $region17: #{tpu_custom_call.1} parent=1 // pred_fallthru
      _
    // Predicated region
    $region18: #{tpu_custom_call.1} parent=1 // pred_check
      _
    $region19: #{tpu_custom_call.1} parent=1 // pred_check_branch
      %30 = sbr.rel (0) target = $region21
    $region20: #{tpu_custom_call.1} parent=1 // pred_region
      %31 = dma.done [#allocation3], 8448
    $region21: #{tpu_custom_call.1} parent=1 // pred_fallthru
      _
    %v33 = vld [vmem:[%s0] sm:$0xff]
    %v34 = vpack.c.bf16 %v33, %v33
    %v35 = vld [vmem:[#allocation2] sm:$0xff]
    %v36 = vld [vmem:[#allocation2 + $0x8] sm:$0xff]
    %v37 = vld [vmem:[#allocation2 + $0x10] sm:$0xff]
    %v38 = vld [vmem:[#allocation2 + $0x18] sm:$0xff]
    %v39 = vld [vmem:[#allocation2 + $0x20] sm:$0xff]
    %v40 = vld [vmem:[#allocation2 + $0x28] sm:$0xff]
    %v41 = vld [vmem:[#allocation2 + $0x30] sm:$0xff]
    %v42 = vld [vmem:[#allocation2 + $0x38] sm:$0xff]
    %v43 = vld [vmem:[#allocation2 + $0x40] sm:$0xff]
    %v44 = vld [vmem:[#allocation2 + $0x48] sm:$0xff]
    %v45 = vld [vmem:[#allocation2 + $0x50] sm:$0xff]
    %v46 = vld [vmem:[#allocation2 + $0x58] sm:$0xff]
    %v47 = vld [vmem:[#allocation2 + $0x60] sm:$0xff]
    %v48 = vld [vmem:[#allocation2 + $0x68] sm:$0xff]
    %v49 = vld [vmem:[#allocation2 + $0x70] sm:$0xff]
    %v50 = vld [vmem:[#allocation2 + $0x78] sm:$0xff]
    %v51 = vld [vmem:[#allocation2 + $0x80] sm:$0xf]
    %v52 = vld [vmem:[#allocation2 + $0x84] sm:$0xff]
    %v53 = vld [vmem:[#allocation2 + $0x8c] sm:$0xff]
    %v54 = vld [vmem:[#allocation2 + $0x94] sm:$0xff]
    %v55 = vld [vmem:[#allocation2 + $0x9c] sm:$0xff]
    %v56 = vld [vmem:[#allocation2 + $0xa4] sm:$0xff]
    %v57 = vld [vmem:[#allocation2 + $0xac] sm:$0xff]
    %v58 = vld [vmem:[#allocation2 + $0xb4] sm:$0xff]
    %v59 = vld [vmem:[#allocation2 + $0xbc] sm:$0xff]
    %v60 = vld [vmem:[#allocation2 + $0xc4] sm:$0xff]
    %v61 = vld [vmem:[#allocation2 + $0xcc] sm:$0xff]
    %v62 = vld [vmem:[#allocation2 + $0xd4] sm:$0xff]
    %v63 = vld [vmem:[#allocation2 + $0xdc] sm:$0xff]
    %v64 = vld [vmem:[#allocation2 + $0xe4] sm:$0xff]
    %v65 = vld [vmem:[#allocation2 + $0xec] sm:$0xff]
    %v66 = vld [vmem:[#allocation2 + $0xf4] sm:$0xff]
    %v67 = vld [vmem:[#allocation2 + $0xfc] sm:$0xff]
    %v68 = vld [vmem:[#allocation2 + $0x104] sm:$0xf]
    %v69 = vld [vmem:[#allocation2 + $0x108] sm:$0xff]
    %v70 = vld [vmem:[#allocation2 + $0x110] sm:$0xff]
    %v71 = vld [vmem:[#allocation2 + $0x118] sm:$0xff]
    %v72 = vld [vmem:[#allocation2 + $0x120] sm:$0xff]
    %v73 = vld [vmem:[#allocation2 + $0x128] sm:$0xff]
    %v74 = vld [vmem:[#allocation2 + $0x130] sm:$0xff]
    %v75 = vld [vmem:[#allocation2 + $0x138] sm:$0xff]
    %v76 = vld [vmem:[#allocation2 + $0x140] sm:$0xff]
    %v77 = vld [vmem:[#allocation2 + $0x148] sm:$0xff]
    %v78 = vld [vmem:[#allocation2 + $0x150] sm:$0xff]
    %v79 = vld [vmem:[#allocation2 + $0x158] sm:$0xff]
    %v80 = vld [vmem:[#allocation2 + $0x160] sm:$0xff]
    %v81 = vld [vmem:[#allocation2 + $0x168] sm:$0xff]
    %v82 = vld [vmem:[#allocation2 + $0x170] sm:$0xff]
    %v83 = vld [vmem:[#allocation2 + $0x178] sm:$0xff]
    %v84 = vld [vmem:[#allocation2 + $0x180] sm:$0xff]
    %v85 = vld [vmem:[#allocation2 + $0x188] sm:$0xf]
    %v86 = vld [vmem:[#allocation2 + $0x18c] sm:$0xff]
    %v87 = vld [vmem:[#allocation2 + $0x194] sm:$0xff]
    %v88 = vld [vmem:[#allocation2 + $0x19c] sm:$0xff]
    %v89 = vld [vmem:[#allocation2 + $0x1a4] sm:$0xff]
    %v90 = vld [vmem:[#allocation2 + $0x1ac] sm:$0xff]
    %v91 = vld [vmem:[#allocation2 + $0x1b4] sm:$0xff]
    %v92 = vld [vmem:[#allocation2 + $0x1bc] sm:$0xff]
    %v93 = vld [vmem:[#allocation2 + $0x1c4] sm:$0xff]
    %v94 = vld [vmem:[#allocation2 + $0x1cc] sm:$0xff]
    %v95 = vld [vmem:[#allocation2 + $0x1d4] sm:$0xff]
    %v96 = vld [vmem:[#allocation2 + $0x1dc] sm:$0xff]
    %v97 = vld [vmem:[#allocation2 + $0x1e4] sm:$0xff]
    %v98 = vld [vmem:[#allocation2 + $0x1ec] sm:$0xff]
    %v99 = vld [vmem:[#allocation2 + $0x1f4] sm:$0xff]
    %v100 = vld [vmem:[#allocation2 + $0x1fc] sm:$0xff]
    %v101 = vld [vmem:[#allocation2 + $0x204] sm:$0xff]
    %v102 = vld [vmem:[#allocation2 + $0x20c] sm:$0xf]
    %v171 = vunpack.c.l.b16 %v35
    %v172 = vunpack.c.h.b16 %v35
    %v173 = vunpack.c.l.b16 %v36
    %v174 = vunpack.c.h.b16 %v36
    %v175 = vunpack.c.l.b16 %v37
    %v176 = vunpack.c.h.b16 %v37
    %v177 = vunpack.c.l.b16 %v38
    %v178 = vunpack.c.h.b16 %v38
    %v179 = vunpack.c.l.b16 %v39
    %v180 = vunpack.c.h.b16 %v39
    %v181 = vunpack.c.l.b16 %v40
    %v182 = vunpack.c.h.b16 %v40
    %v183 = vunpack.c.l.b16 %v41
    %v184 = vunpack.c.h.b16 %v41
    %v185 = vunpack.c.l.b16 %v42
    %v186 = vunpack.c.h.b16 %v42
    %v187 = vunpack.c.l.b16 %v43
    %v188 = vunpack.c.h.b16 %v43
    %v189 = vunpack.c.l.b16 %v44
    %v190 = vunpack.c.h.b16 %v44
    %v191 = vunpack.c.l.b16 %v45
    %v192 = vunpack.c.h.b16 %v45
    %v193 = vunpack.c.l.b16 %v46
    %v194 = vunpack.c.h.b16 %v46
    %v195 = vunpack.c.l.b16 %v47
    %v196 = vunpack.c.h.b16 %v47
    %v197 = vunpack.c.l.b16 %v48
    %v198 = vunpack.c.h.b16 %v48
    %v199 = vunpack.c.l.b16 %v49
    %v200 = vunpack.c.h.b16 %v49
    %v201 = vunpack.c.l.b16 %v50
    %v202 = vunpack.c.h.b16 %v50
    %v203 = vunpack.c.l.b16 %v51
    %v204 = vunpack.c.l.b16 %v52
    %v205 = vunpack.c.h.b16 %v52
    %v206 = vunpack.c.l.b16 %v53
    %v207 = vunpack.c.h.b16 %v53
    %v208 = vunpack.c.l.b16 %v54
    %v209 = vunpack.c.h.b16 %v54
    %v210 = vunpack.c.l.b16 %v55
    %v211 = vunpack.c.h.b16 %v55
    %v212 = vunpack.c.l.b16 %v56
    %v213 = vunpack.c.h.b16 %v56
    %v214 = vunpack.c.l.b16 %v57
    %v215 = vunpack.c.h.b16 %v57
    %v216 = vunpack.c.l.b16 %v58
    %v217 = vunpack.c.h.b16 %v58
    %v218 = vunpack.c.l.b16 %v59
    %v219 = vunpack.c.h.b16 %v59
    %v220 = vunpack.c.l.b16 %v60
    %v221 = vunpack.c.h.b16 %v60
    %v222 = vunpack.c.l.b16 %v61
    %v223 = vunpack.c.h.b16 %v61
    %v224 = vunpack.c.l.b16 %v62
    %v225 = vunpack.c.h.b16 %v62
    %v226 = vunpack.c.l.b16 %v63
    %v227 = vunpack.c.h.b16 %v63
    %v228 = vunpack.c.l.b16 %v64
    %v229 = vunpack.c.h.b16 %v64
    %v230 = vunpack.c.l.b16 %v65
    %v231 = vunpack.c.h.b16 %v65
    %v232 = vunpack.c.l.b16 %v66
    %v233 = vunpack.c.h.b16 %v66
    %v234 = vunpack.c.l.b16 %v67
    %v235 = vunpack.c.h.b16 %v67
    %v236 = vunpack.c.l.b16 %v68
    %v237 = vunpack.c.l.b16 %v69
    %v238 = vunpack.c.h.b16 %v69
    %v239 = vunpack.c.l.b16 %v70
    %v240 = vunpack.c.h.b16 %v70
    %v241 = vunpack.c.l.b16 %v71
    %v242 = vunpack.c.h.b16 %v71
    %v243 = vunpack.c.l.b16 %v72
    %v244 = vunpack.c.h.b16 %v72
    %v245 = vunpack.c.l.b16 %v73
    %v246 = vunpack.c.h.b16 %v73
    %v247 = vunpack.c.l.b16 %v74
    %v248 = vunpack.c.h.b16 %v74
    %v249 = vunpack.c.l.b16 %v75
    %v250 = vunpack.c.h.b16 %v75
    %v251 = vunpack.c.l.b16 %v76
    %v252 = vunpack.c.h.b16 %v76
    %v253 = vunpack.c.l.b16 %v77
    %v254 = vunpack.c.h.b16 %v77
    %v255 = vunpack.c.l.b16 %v78
    %v256 = vunpack.c.h.b16 %v78
    %v257 = vunpack.c.l.b16 %v79
    %v258 = vunpack.c.h.b16 %v79
    %v259 = vunpack.c.l.b16 %v80
    %v260 = vunpack.c.h.b16 %v80
    %v261 = vunpack.c.l.b16 %v81
    %v262 = vunpack.c.h.b16 %v81
    %v263 = vunpack.c.l.b16 %v82
    %v264 = vunpack.c.h.b16 %v82
    %v265 = vunpack.c.l.b16 %v83
    %v266 = vunpack.c.h.b16 %v83
    %v267 = vunpack.c.l.b16 %v84
    %v268 = vunpack.c.h.b16 %v84
    %v269 = vunpack.c.l.b16 %v85
    %v270 = vunpack.c.l.b16 %v86
    %v271 = vunpack.c.h.b16 %v86
    %v272 = vunpack.c.l.b16 %v87
    %v273 = vunpack.c.h.b16 %v87
    %v274 = vunpack.c.l.b16 %v88
    %v275 = vunpack.c.h.b16 %v88
    %v276 = vunpack.c.l.b16 %v89
    %v277 = vunpack.c.h.b16 %v89
    %v278 = vunpack.c.l.b16 %v90
    %v279 = vunpack.c.h.b16 %v90
    %v280 = vunpack.c.l.b16 %v91
    %v281 = vunpack.c.h.b16 %v91
    %v282 = vunpack.c.l.b16 %v92
    %v283 = vunpack.c.h.b16 %v92
    %v284 = vunpack.c.l.b16 %v93
    %v285 = vunpack.c.h.b16 %v93
    %v286 = vunpack.c.l.b16 %v94
    %v287 = vunpack.c.h.b16 %v94
    %v288 = vunpack.c.l.b16 %v95
    %v289 = vunpack.c.h.b16 %v95
    %v290 = vunpack.c.l.b16 %v96
    %v291 = vunpack.c.h.b16 %v96
    %v292 = vunpack.c.l.b16 %v97
    %v293 = vunpack.c.h.b16 %v97
    %v294 = vunpack.c.l.b16 %v98
    %v295 = vunpack.c.h.b16 %v98
    %v296 = vunpack.c.l.b16 %v99
    %v297 = vunpack.c.h.b16 %v99
    %v298 = vunpack.c.l.b16 %v100
    %v299 = vunpack.c.h.b16 %v100
    %v300 = vunpack.c.l.b16 %v101
    %v301 = vunpack.c.h.b16 %v101
    %v302 = vunpack.c.l.b16 %v102
    %v303 = vpack.c.b16 %v204, %v171
    %v304 = vpack.c.b16 %v205, %v172
    %v305 = vpack.c.b16 %v206, %v173
    %v306 = vpack.c.b16 %v207, %v174
    %v307 = vpack.c.b16 %v208, %v175
    %v308 = vpack.c.b16 %v209, %v176
    %v309 = vpack.c.b16 %v210, %v177
    %v310 = vpack.c.b16 %v211, %v178
    %v311 = vpack.c.b16 %v212, %v179
    %v312 = vpack.c.b16 %v213, %v180
    %v313 = vpack.c.b16 %v214, %v181
    %v314 = vpack.c.b16 %v215, %v182
    %v315 = vpack.c.b16 %v216, %v183
    %v316 = vpack.c.b16 %v217, %v184
    %v317 = vpack.c.b16 %v218, %v185
    %v318 = vpack.c.b16 %v219, %v186
    %v319 = vpack.c.b16 %v220, %v187
    %v320 = vpack.c.b16 %v221, %v188
    %v321 = vpack.c.b16 %v222, %v189
    %v322 = vpack.c.b16 %v223, %v190
    %v323 = vpack.c.b16 %v224, %v191
    %v324 = vpack.c.b16 %v225, %v192
    %v325 = vpack.c.b16 %v226, %v193
    %v326 = vpack.c.b16 %v227, %v194
    %v327 = vpack.c.b16 %v228, %v195
    %v328 = vpack.c.b16 %v229, %v196
    %v329 = vpack.c.b16 %v230, %v197
    %v330 = vpack.c.b16 %v231, %v198
    %v331 = vpack.c.b16 %v232, %v199
    %v332 = vpack.c.b16 %v233, %v200
    %v333 = vpack.c.b16 %v234, %v201
    %v334 = vpack.c.b16 %v235, %v202
    %v335 = vpack.c.b16 %v236, %v203
    %v336 = vpack.c.b16 %v270, %v237
    %v337 = vpack.c.b16 %v271, %v238
    %v338 = vpack.c.b16 %v272, %v239
    %v339 = vpack.c.b16 %v273, %v240
    %v340 = vpack.c.b16 %v274, %v241
    %v341 = vpack.c.b16 %v275, %v242
    %v342 = vpack.c.b16 %v276, %v243
    %v343 = vpack.c.b16 %v277, %v244
    %v344 = vpack.c.b16 %v278, %v245
    %v345 = vpack.c.b16 %v279, %v246
    %v346 = vpack.c.b16 %v280, %v247
    %v347 = vpack.c.b16 %v281, %v248
    %v348 = vpack.c.b16 %v282, %v249
    %v349 = vpack.c.b16 %v283, %v250
    %v350 = vpack.c.b16 %v284, %v251
    %v351 = vpack.c.b16 %v285, %v252
    %v352 = vpack.c.b16 %v286, %v253
    %v353 = vpack.c.b16 %v287, %v254
    %v354 = vpack.c.b16 %v288, %v255
    %v355 = vpack.c.b16 %v289, %v256
    %v356 = vpack.c.b16 %v290, %v257
    %v357 = vpack.c.b16 %v291, %v258
    %v358 = vpack.c.b16 %v292, %v259
    %v359 = vpack.c.b16 %v293, %v260
    %v360 = vpack.c.b16 %v294, %v261
    %v361 = vpack.c.b16 %v295, %v262
    %v362 = vpack.c.b16 %v296, %v263
    %v363 = vpack.c.b16 %v297, %v264
    %v364 = vpack.c.b16 %v298, %v265
    %v365 = vpack.c.b16 %v299, %v266
    %v366 = vpack.c.b16 %v300, %v267
    %v367 = vpack.c.b16 %v301, %v268
    %v368 = vpack.c.b16 %v302, %v269
    %vm435 = vcmask 261120
    %v437 = vsel %vm435, %v34, 0
    %439 = vmatprep.subr.bf16.mxu0 %v304
    %440 = vmatpush1.bf16.msra.mxu0 %v303
    %441 = vmatprep.subr.bf16.mxu0 %v337
    %442 = vmatpush1.bf16.msra.mxu0 %v336
    %443 = vmatprep.subr.bf16.mxu0 0
    %444 = vmatpush1.bf16.msra.mxu0 0
    %445 = vmatprep.subr.bf16.mxu0 0
    %446 = vmatpush1.bf16.msra.mxu0 0
    %447 = vmatprep.subr.bf16.mxu0 0
    %448 = vmatpush1.bf16.msra.mxu0 0
    %449 = vmatprep.subr.bf16.mxu0 0
    %450 = vmatpush1.bf16.msra.mxu0 0
    %451 = vmatprep.subr.bf16.mxu0 0
    %452 = vmatpush1.bf16.msra.mxu0 0
    %453 = vmatprep.subr.bf16.mxu0 0
    %454 = vmatpush1.bf16.msra.mxu0 0
    %455 = vmatprep.subr.bf16.mxu0 0
    %456 = vmatpush1.bf16.msra.mxu0 0
    %457 = vmatprep.subr.bf16.mxu0 0
    %458 = vmatpush1.bf16.msra.mxu0 0
    %459 = vmatprep.subr.bf16.mxu0 0
    %460 = vmatpush1.bf16.msra.mxu0 0
    %461 = vmatprep.subr.bf16.mxu0 0
    %462 = vmatpush1.bf16.msra.mxu0 0
    %463 = vmatprep.subr.bf16.mxu0 0
    %464 = vmatpush1.bf16.msra.mxu0 0
    %465 = vmatprep.subr.bf16.mxu0 0
    %466 = vmatpush1.bf16.msra.mxu0 0
    %467 = vmatprep.subr.bf16.mxu0 0
    %468 = vmatpush1.bf16.msra.mxu0 0
    %469 = vmatprep.subr.bf16.mxu0 0
    %470 = vmatpush1.bf16.msra.mxu0 0
    %471 = vmatprep.mubr.bf16.mxu0 0
    %472 = vmatmul.mubr.bf16.gmra.mrb[0].mxu0 %v437
    %v473 = vpop.f32.mrb[0].mxu0
    %v474 = vadd.f32 0.0, %v473
    %v475 = vpop.f32.mrb[0].mxu0
    %v476 = vadd.f32 0.0, %v475
    %v477 = vpop.f32.mrb[0].mxu0
    %v478 = vpop.f32.mrb[0].mxu0
    %479 = vdwg.mxu0
    %480 = vmatprep.subr.bf16.mxu0 %v306
    %481 = vmatpush1.bf16.msra.mxu0 %v305
    %482 = vmatprep.subr.bf16.mxu0 %v339
    %483 = vmatpush1.bf16.msra.mxu0 %v338
    %484 = vmatprep.subr.bf16.mxu0 0
    %485 = vmatpush1.bf16.msra.mxu0 0
    %486 = vmatprep.subr.bf16.mxu0 0
    %487 = vmatpush1.bf16.msra.mxu0 0
    %488 = vmatprep.subr.bf16.mxu0 0
    %489 = vmatpush1.bf16.msra.mxu0 0
    %490 = vmatprep.subr.bf16.mxu0 0
    %491 = vmatpush1.bf16.msra.mxu0 0
    %492 = vmatprep.subr.bf16.mxu0 0
    %493 = vmatpush1.bf16.msra.mxu0 0
    %494 = vmatprep.subr.bf16.mxu0 0
    %495 = vmatpush1.bf16.msra.mxu0 0
    %496 = vmatprep.subr.bf16.mxu0 0
    %497 = vmatpush1.bf16.msra.mxu0 0
    %498 = vmatprep.subr.bf16.mxu0 0
    %499 = vmatpush1.bf16.msra.mxu0 0
    %500 = vmatprep.subr.bf16.mxu0 0
    %501 = vmatpush1.bf16.msra.mxu0 0
    %502 = vmatprep.subr.bf16.mxu0 0
    %503 = vmatpush1.bf16.msra.mxu0 0
    %504 = vmatprep.subr.bf16.mxu0 0
    %505 = vmatpush1.bf16.msra.mxu0 0
    %506 = vmatprep.subr.bf16.mxu0 0
    %507 = vmatpush1.bf16.msra.mxu0 0
    %508 = vmatprep.subr.bf16.mxu0 0
    %509 = vmatpush1.bf16.msra.mxu0 0
    %510 = vmatprep.subr.bf16.mxu0 0
    %511 = vmatpush1.bf16.msra.mxu0 0
    %512 = vmatprep.mubr.bf16.mxu0 0
    %513 = vmatmul.mubr.bf16.gmra.mrb[0].mxu0 %v437
    %v514 = vpop.f32.mrb[0].mxu0
    %v515 = vadd.f32 0.0, %v514
    %v516 = vpop.f32.mrb[0].mxu0
    %v517 = vadd.f32 0.0, %v516
    %v518 = vpop.f32.mrb[0].mxu0
    %v519 = vpop.f32.mrb[0].mxu0
    %520 = vdwg.mxu0
    %521 = vmatprep.subr.bf16.mxu0 %v308
    %522 = vmatpush1.bf16.msra.mxu0 %v307
    %523 = vmatprep.subr.bf16.mxu0 %v341
    %524 = vmatpush1.bf16.msra.mxu0 %v340
    %525 = vmatprep.subr.bf16.mxu0 0
    %526 = vmatpush1.bf16.msra.mxu0 0
    %527 = vmatprep.subr.bf16.mxu0 0
    %528 = vmatpush1.bf16.msra.mxu0 0
    %529 = vmatprep.subr.bf16.mxu0 0
    %530 = vmatpush1.bf16.msra.mxu0 0
    %531 = vmatprep.subr.bf16.mxu0 0
    %532 = vmatpush1.bf16.msra.mxu0 0
    %533 = vmatprep.subr.bf16.mxu0 0
    %534 = vmatpush1.bf16.msra.mxu0 0
    %535 = vmatprep.subr.bf16.mxu0 0
    %536 = vmatpush1.bf16.msra.mxu0 0
    %537 = vmatprep.subr.bf16.mxu0 0
    %538 = vmatpush1.bf16.msra.mxu0 0
    %539 = vmatprep.subr.bf16.mxu0 0
    %540 = vmatpush1.bf16.msra.mxu0 0
    %541 = vmatprep.subr.bf16.mxu0 0
    %542 = vmatpush1.bf16.msra.mxu0 0
    %543 = vmatprep.subr.bf16.mxu0 0
    %544 = vmatpush1.bf16.msra.mxu0 0
    %545 = vmatprep.subr.bf16.mxu0 0
    %546 = vmatpush1.bf16.msra.mxu0 0
    %547 = vmatprep.subr.bf16.mxu0 0
    %548 = vmatpush1.bf16.msra.mxu0 0
    %549 = vmatprep.subr.bf16.mxu0 0
    %550 = vmatpush1.bf16.msra.mxu0 0
    %551 = vmatprep.subr.bf16.mxu0 0
    %552 = vmatpush1.bf16.msra.mxu0 0
    %553 = vmatprep.mubr.bf16.mxu0 0
    %554 = vmatmul.mubr.bf16.gmra.mrb[0].mxu0 %v437
    %v555 = vpop.f32.mrb[0].mxu0
    %v556 = vadd.f32 0.0, %v555
    %v557 = vpop.f32.mrb[0].mxu0
    %v558 = vadd.f32 0.0, %v557
    %v559 = vpop.f32.mrb[0].mxu0
    %v560 = vpop.f32.mrb[0].mxu0
    %561 = vdwg.mxu0
    %562 = vmatprep.subr.bf16.mxu0 %v310
    %563 = vmatpush1.bf16.msra.mxu0 %v309
    %564 = vmatprep.subr.bf16.mxu0 %v343
    %565 = vmatpush1.bf16.msra.mxu0 %v342
    %566 = vmatprep.subr.bf16.mxu0 0
    %567 = vmatpush1.bf16.msra.mxu0 0
    %568 = vmatprep.subr.bf16.mxu0 0
    %569 = vmatpush1.bf16.msra.mxu0 0
    %570 = vmatprep.subr.bf16.mxu0 0
    %571 = vmatpush1.bf16.msra.mxu0 0
    %572 = vmatprep.subr.bf16.mxu0 0
    %573 = vmatpush1.bf16.msra.mxu0 0
    %574 = vmatprep.subr.bf16.mxu0 0
    %575 = vmatpush1.bf16.msra.mxu0 0
    %576 = vmatprep.subr.bf16.mxu0 0
    %577 = vmatpush1.bf16.msra.mxu0 0
    %578 = vmatprep.subr.bf16.mxu0 0
    %579 = vmatpush1.bf16.msra.mxu0 0
    %580 = vmatprep.subr.bf16.mxu0 0
    %581 = vmatpush1.bf16.msra.mxu0 0
    %582 = vmatprep.subr.bf16.mxu0 0
    %583 = vmatpush1.bf16.msra.mxu0 0
    %584 = vmatprep.subr.bf16.mxu0 0
    %585 = vmatpush1.bf16.msra.mxu0 0
    %586 = vmatprep.subr.bf16.mxu0 0
    %587 = vmatpush1.bf16.msra.mxu0 0
    %588 = vmatprep.subr.bf16.mxu0 0
    %589 = vmatpush1.bf16.msra.mxu0 0
    %590 = vmatprep.subr.bf16.mxu0 0
    %591 = vmatpush1.bf16.msra.mxu0 0
    %592 = vmatprep.subr.bf16.mxu0 0
    %593 = vmatpush1.bf16.msra.mxu0 0
    %594 = vmatprep.mubr.bf16.mxu0 0
    %595 = vmatmul.mubr.bf16.gmra.mrb[0].mxu0 %v437
    %v596 = vpop.f32.mrb[0].mxu0
    %v597 = vadd.f32 0.0, %v596
    %v598 = vpop.f32.mrb[0].mxu0
    %v599 = vadd.f32 0.0, %v598
    %v600 = vpop.f32.mrb[0].mxu0
    %v601 = vpop.f32.mrb[0].mxu0
    %602 = vdwg.mxu0
    %603 = vmatprep.subr.bf16.mxu0 %v312
    %604 = vmatpush1.bf16.msra.mxu0 %v311
    %605 = vmatprep.subr.bf16.mxu0 %v345
    %606 = vmatpush1.bf16.msra.mxu0 %v344
    %607 = vmatprep.subr.bf16.mxu0 0
    %608 = vmatpush1.bf16.msra.mxu0 0
    %609 = vmatprep.subr.bf16.mxu0 0
    %610 = vmatpush1.bf16.msra.mxu0 0
    %611 = vmatprep.subr.bf16.mxu0 0
    %612 = vmatpush1.bf16.msra.mxu0 0
    %613 = vmatprep.subr.bf16.mxu0 0
    %614 = vmatpush1.bf16.msra.mxu0 0
    %615 = vmatprep.subr.bf16.mxu0 0
    %616 = vmatpush1.bf16.msra.mxu0 0
    %617 = vmatprep.subr.bf16.mxu0 0
    %618 = vmatpush1.bf16.msra.mxu0 0
    %619 = vmatprep.subr.bf16.mxu0 0
    %620 = vmatpush1.bf16.msra.mxu0 0
    %621 = vmatprep.subr.bf16.mxu0 0
    %622 = vmatpush1.bf16.msra.mxu0 0
    %623 = vmatprep.subr.bf16.mxu0 0
    %624 = vmatpush1.bf16.msra.mxu0 0
    %625 = vmatprep.subr.bf16.mxu0 0
    %626 = vmatpush1.bf16.msra.mxu0 0
    %627 = vmatprep.subr.bf16.mxu0 0
    %628 = vmatpush1.bf16.msra.mxu0 0
    %629 = vmatprep.subr.bf16.mxu0 0
    %630 = vmatpush1.bf16.msra.mxu0 0
    %631 = vmatprep.subr.bf16.mxu0 0
    %632 = vmatpush1.bf16.msra.mxu0 0
    %633 = vmatprep.subr.bf16.mxu0 0
    %634 = vmatpush1.bf16.msra.mxu0 0
    %635 = vmatprep.mubr.bf16.mxu0 0
    %636 = vmatmul.mubr.bf16.gmra.mrb[0].mxu0 %v437
    %v637 = vpop.f32.mrb[0].mxu0
    %v638 = vadd.f32 0.0, %v637
    %v639 = vpop.f32.mrb[0].mxu0
    %v640 = vadd.f32 0.0, %v639
    %v641 = vpop.f32.mrb[0].mxu0
    %v642 = vpop.f32.mrb[0].mxu0
    %643 = vdwg.mxu0
    %644 = vmatprep.subr.bf16.mxu0 %v314
    %645 = vmatpush1.bf16.msra.mxu0 %v313
    %646 = vmatprep.subr.bf16.mxu0 %v347
    %647 = vmatpush1.bf16.msra.mxu0 %v346
    %648 = vmatprep.subr.bf16.mxu0 0
    %649 = vmatpush1.bf16.msra.mxu0 0
    %650 = vmatprep.subr.bf16.mxu0 0
    %651 = vmatpush1.bf16.msra.mxu0 0
    %652 = vmatprep.subr.bf16.mxu0 0
    %653 = vmatpush1.bf16.msra.mxu0 0
    %654 = vmatprep.subr.bf16.mxu0 0
    %655 = vmatpush1.bf16.msra.mxu0 0
    %656 = vmatprep.subr.bf16.mxu0 0
    %657 = vmatpush1.bf16.msra.mxu0 0
    %658 = vmatprep.subr.bf16.mxu0 0
    %659 = vmatpush1.bf16.msra.mxu0 0
    %660 = vmatprep.subr.bf16.mxu0 0
    %661 = vmatpush1.bf16.msra.mxu0 0
    %662 = vmatprep.subr.bf16.mxu0 0
    %663 = vmatpush1.bf16.msra.mxu0 0
    %664 = vmatprep.subr.bf16.mxu0 0
    %665 = vmatpush1.bf16.msra.mxu0 0
    %666 = vmatprep.subr.bf16.mxu0 0
    %667 = vmatpush1.bf16.msra.mxu0 0
    %668 = vmatprep.subr.bf16.mxu0 0
    %669 = vmatpush1.bf16.msra.mxu0 0
    %670 = vmatprep.subr.bf16.mxu0 0
    %671 = vmatpush1.bf16.msra.mxu0 0
    %672 = vmatprep.subr.bf16.mxu0 0
    %673 = vmatpush1.bf16.msra.mxu0 0
    %674 = vmatprep.subr.bf16.mxu0 0
    %675 = vmatpush1.bf16.msra.mxu0 0
    %676 = vmatprep.mubr.bf16.mxu0 0
    %677 = vmatmul.mubr.bf16.gmra.mrb[0].mxu0 %v437
    %v678 = vpop.f32.mrb[0].mxu0
    %v679 = vadd.f32 0.0, %v678
    %v680 = vpop.f32.mrb[0].mxu0
    %v681 = vadd.f32 0.0, %v680
    %v682 = vpop.f32.mrb[0].mxu0
    %v683 = vpop.f32.mrb[0].mxu0
    %684 = vdwg.mxu0
    %685 = vmatprep.subr.bf16.mxu0 %v316
    %686 = vmatpush1.bf16.msra.mxu0 %v315
    %687 = vmatprep.subr.bf16.mxu0 %v349
    %688 = vmatpush1.bf16.msra.mxu0 %v348
    %689 = vmatprep.subr.bf16.mxu0 0
    %690 = vmatpush1.bf16.msra.mxu0 0
    %691 = vmatprep.subr.bf16.mxu0 0
    %692 = vmatpush1.bf16.msra.mxu0 0
    %693 = vmatprep.subr.bf16.mxu0 0
    %694 = vmatpush1.bf16.msra.mxu0 0
    %695 = vmatprep.subr.bf16.mxu0 0
    %696 = vmatpush1.bf16.msra.mxu0 0
    %697 = vmatprep.subr.bf16.mxu0 0
    %698 = vmatpush1.bf16.msra.mxu0 0
    %699 = vmatprep.subr.bf16.mxu0 0
    %700 = vmatpush1.bf16.msra.mxu0 0
    %701 = vmatprep.subr.bf16.mxu0 0
    %702 = vmatpush1.bf16.msra.mxu0 0
    %703 = vmatprep.subr.bf16.mxu0 0
    %704 = vmatpush1.bf16.msra.mxu0 0
    %705 = vmatprep.subr.bf16.mxu0 0
    %706 = vmatpush1.bf16.msra.mxu0 0
    %707 = vmatprep.subr.bf16.mxu0 0
    %708 = vmatpush1.bf16.msra.mxu0 0
    %709 = vmatprep.subr.bf16.mxu0 0
    %710 = vmatpush1.bf16.msra.mxu0 0
    %711 = vmatprep.subr.bf16.mxu0 0
    %712 = vmatpush1.bf16.msra.mxu0 0
    %713 = vmatprep.subr.bf16.mxu0 0
    %714 = vmatpush1.bf16.msra.mxu0 0
    %715 = vmatprep.subr.bf16.mxu0 0
    %716 = vmatpush1.bf16.msra.mxu0 0
    %717 = vmatprep.mubr.bf16.mxu0 0
    %718 = vmatmul.mubr.bf16.gmra.mrb[0].mxu0 %v437
    %v719 = vpop.f32.mrb[0].mxu0
    %v720 = vadd.f32 0.0, %v719
    %v721 = vpop.f32.mrb[0].mxu0
    %v722 = vadd.f32 0.0, %v721
    %v723 = vpop.f32.mrb[0].mxu0
    %v724 = vpop.f32.mrb[0].mxu0
    %725 = vdwg.mxu0
    %726 = vmatprep.subr.bf16.mxu0 %v318
    %727 = vmatpush1.bf16.msra.mxu0 %v317
    %728 = vmatprep.subr.bf16.mxu0 %v351
    %729 = vmatpush1.bf16.msra.mxu0 %v350
    %730 = vmatprep.subr.bf16.mxu0 0
    %731 = vmatpush1.bf16.msra.mxu0 0
    %732 = vmatprep.subr.bf16.mxu0 0
    %733 = vmatpush1.bf16.msra.mxu0 0
    %734 = vmatprep.subr.bf16.mxu0 0
    %735 = vmatpush1.bf16.msra.mxu0 0
    %736 = vmatprep.subr.bf16.mxu0 0
    %737 = vmatpush1.bf16.msra.mxu0 0
    %738 = vmatprep.subr.bf16.mxu0 0
    %739 = vmatpush1.bf16.msra.mxu0 0
    %740 = vmatprep.subr.bf16.mxu0 0
    %741 = vmatpush1.bf16.msra.mxu0 0
    %742 = vmatprep.subr.bf16.mxu0 0
    %743 = vmatpush1.bf16.msra.mxu0 0
    %744 = vmatprep.subr.bf16.mxu0 0
    %745 = vmatpush1.bf16.msra.mxu0 0
    %746 = vmatprep.subr.bf16.mxu0 0
    %747 = vmatpush1.bf16.msra.mxu0 0
    %748 = vmatprep.subr.bf16.mxu0 0
    %749 = vmatpush1.bf16.msra.mxu0 0
    %750 = vmatprep.subr.bf16.mxu0 0
    %751 = vmatpush1.bf16.msra.mxu0 0
    %752 = vmatprep.subr.bf16.mxu0 0
    %753 = vmatpush1.bf16.msra.mxu0 0
    %754 = vmatprep.subr.bf16.mxu0 0
    %755 = vmatpush1.bf16.msra.mxu0 0
    %756 = vmatprep.subr.bf16.mxu0 0
    %757 = vmatpush1.bf16.msra.mxu0 0
    %758 = vmatprep.mubr.bf16.mxu0 0
    %759 = vmatmul.mubr.bf16.gmra.mrb[0].mxu0 %v437
    %v760 = vpop.f32.mrb[0].mxu0
    %v761 = vadd.f32 0.0, %v760
    %v762 = vpop.f32.mrb[0].mxu0
    %v763 = vadd.f32 0.0, %v762
    %v764 = vpop.f32.mrb[0].mxu0
    %v765 = vpop.f32.mrb[0].mxu0
    %766 = vdwg.mxu0
    %767 = vmatprep.subr.bf16.mxu0 %v320
    %768 = vmatpush1.bf16.msra.mxu0 %v319
    %769 = vmatprep.subr.bf16.mxu0 %v353
    %770 = vmatpush1.bf16.msra.mxu0 %v352
    %771 = vmatprep.subr.bf16.mxu0 0
    %772 = vmatpush1.bf16.msra.mxu0 0
    %773 = vmatprep.subr.bf16.mxu0 0
    %774 = vmatpush1.bf16.msra.mxu0 0
    %775 = vmatprep.subr.bf16.mxu0 0
    %776 = vmatpush1.bf16.msra.mxu0 0
    %777 = vmatprep.subr.bf16.mxu0 0
    %778 = vmatpush1.bf16.msra.mxu0 0
    %779 = vmatprep.subr.bf16.mxu0 0
    %780 = vmatpush1.bf16.msra.mxu0 0
    %781 = vmatprep.subr.bf16.mxu0 0
    %782 = vmatpush1.bf16.msra.mxu0 0
    %783 = vmatprep.subr.bf16.mxu0 0
    %784 = vmatpush1.bf16.msra.mxu0 0
    %785 = vmatprep.subr.bf16.mxu0 0
    %786 = vmatpush1.bf16.msra.mxu0 0
    %787 = vmatprep.subr.bf16.mxu0 0
    %788 = vmatpush1.bf16.msra.mxu0 0
    %789 = vmatprep.subr.bf16.mxu0 0
    %790 = vmatpush1.bf16.msra.mxu0 0
    %791 = vmatprep.subr.bf16.mxu0 0
    %792 = vmatpush1.bf16.msra.mxu0 0
    %793 = vmatprep.subr.bf16.mxu0 0
    %794 = vmatpush1.bf16.msra.mxu0 0
    %795 = vmatprep.subr.bf16.mxu0 0
    %796 = vmatpush1.bf16.msra.mxu0 0
    %797 = vmatprep.subr.bf16.mxu0 0
    %798 = vmatpush1.bf16.msra.mxu0 0
    %799 = vmatprep.mubr.bf16.mxu0 0
    %800 = vmatmul.mubr.bf16.gmra.mrb[0].mxu0 %v437
    %v801 = vpop.f32.mrb[0].mxu0
    %v802 = vadd.f32 0.0, %v801
    %v803 = vpop.f32.mrb[0].mxu0
    %v804 = vadd.f32 0.0, %v803
    %v805 = vpop.f32.mrb[0].mxu0
    %v806 = vpop.f32.mrb[0].mxu0
    %807 = vdwg.mxu0
    %808 = vmatprep.subr.bf16.mxu0 %v322
    %809 = vmatpush1.bf16.msra.mxu0 %v321
    %810 = vmatprep.subr.bf16.mxu0 %v355
    %811 = vmatpush1.bf16.msra.mxu0 %v354
    %812 = vmatprep.subr.bf16.mxu0 0
    %813 = vmatpush1.bf16.msra.mxu0 0
    %814 = vmatprep.subr.bf16.mxu0 0
    %815 = vmatpush1.bf16.msra.mxu0 0
    %816 = vmatprep.subr.bf16.mxu0 0
    %817 = vmatpush1.bf16.msra.mxu0 0
    %818 = vmatprep.subr.bf16.mxu0 0
    %819 = vmatpush1.bf16.msra.mxu0 0
    %820 = vmatprep.subr.bf16.mxu0 0
    %821 = vmatpush1.bf16.msra.mxu0 0
    %822 = vmatprep.subr.bf16.mxu0 0
    %823 = vmatpush1.bf16.msra.mxu0 0
    %824 = vmatprep.subr.bf16.mxu0 0
    %825 = vmatpush1.bf16.msra.mxu0 0
    %826 = vmatprep.subr.bf16.mxu0 0
    %827 = vmatpush1.bf16.msra.mxu0 0
    %828 = vmatprep.subr.bf16.mxu0 0
    %829 = vmatpush1.bf16.msra.mxu0 0
    %830 = vmatprep.subr.bf16.mxu0 0
    %831 = vmatpush1.bf16.msra.mxu0 0
    %832 = vmatprep.subr.bf16.mxu0 0
    %833 = vmatpush1.bf16.msra.mxu0 0
    %834 = vmatprep.subr.bf16.mxu0 0
    %835 = vmatpush1.bf16.msra.mxu0 0
    %836 = vmatprep.subr.bf16.mxu0 0
    %837 = vmatpush1.bf16.msra.mxu0 0
    %838 = vmatprep.subr.bf16.mxu0 0
    %839 = vmatpush1.bf16.msra.mxu0 0
    %840 = vmatprep.mubr.bf16.mxu0 0
    %841 = vmatmul.mubr.bf16.gmra.mrb[0].mxu0 %v437
    %v842 = vpop.f32.mrb[0].mxu0
    %v843 = vadd.f32 0.0, %v842
    %v844 = vpop.f32.mrb[0].mxu0
    %v845 = vadd.f32 0.0, %v844
    %v846 = vpop.f32.mrb[0].mxu0
    %v847 = vpop.f32.mrb[0].mxu0
    %848 = vdwg.mxu0
    %849 = vmatprep.subr.bf16.mxu0 %v324
    %850 = vmatpush1.bf16.msra.mxu0 %v323
    %851 = vmatprep.subr.bf16.mxu0 %v357
    %852 = vmatpush1.bf16.msra.mxu0 %v356
    %853 = vmatprep.subr.bf16.mxu0 0
    %854 = vmatpush1.bf16.msra.mxu0 0
    %855 = vmatprep.subr.bf16.mxu0 0
    %856 = vmatpush1.bf16.msra.mxu0 0
    %857 = vmatprep.subr.bf16.mxu0 0
    %858 = vmatpush1.bf16.msra.mxu0 0
    %859 = vmatprep.subr.bf16.mxu0 0
    %860 = vmatpush1.bf16.msra.mxu0 0
    %861 = vmatprep.subr.bf16.mxu0 0
    %862 = vmatpush1.bf16.msra.mxu0 0
    %863 = vmatprep.subr.bf16.mxu0 0
    %864 = vmatpush1.bf16.msra.mxu0 0
    %865 = vmatprep.subr.bf16.mxu0 0
    %866 = vmatpush1.bf16.msra.mxu0 0
    %867 = vmatprep.subr.bf16.mxu0 0
    %868 = vmatpush1.bf16.msra.mxu0 0
    %869 = vmatprep.subr.bf16.mxu0 0
    %870 = vmatpush1.bf16.msra.mxu0 0
    %871 = vmatprep.subr.bf16.mxu0 0
    %872 = vmatpush1.bf16.msra.mxu0 0
    %873 = vmatprep.subr.bf16.mxu0 0
    %874 = vmatpush1.bf16.msra.mxu0 0
    %875 = vmatprep.subr.bf16.mxu0 0
    %876 = vmatpush1.bf16.msra.mxu0 0
    %877 = vmatprep.subr.bf16.mxu0 0
    %878 = vmatpush1.bf16.msra.mxu0 0
    %879 = vmatprep.subr.bf16.mxu0 0
    %880 = vmatpush1.bf16.msra.mxu0 0
    %881 = vmatprep.mubr.bf16.mxu0 0
    %882 = vmatmul.mubr.bf16.gmra.mrb[0].mxu0 %v437
    %v883 = vpop.f32.mrb[0].mxu0
    %v884 = vadd.f32 0.0, %v883
    %v885 = vpop.f32.mrb[0].mxu0
    %v886 = vadd.f32 0.0, %v885
    %v887 = vpop.f32.mrb[0].mxu0
    %v888 = vpop.f32.mrb[0].mxu0
    %889 = vdwg.mxu0
    %890 = vmatprep.subr.bf16.mxu0 %v326
    %891 = vmatpush1.bf16.msra.mxu0 %v325
    %892 = vmatprep.subr.bf16.mxu0 %v359
    %893 = vmatpush1.bf16.msra.mxu0 %v358
    %894 = vmatprep.subr.bf16.mxu0 0
    %895 = vmatpush1.bf16.msra.mxu0 0
    %896 = vmatprep.subr.bf16.mxu0 0
    %897 = vmatpush1.bf16.msra.mxu0 0
    %898 = vmatprep.subr.bf16.mxu0 0
    %899 = vmatpush1.bf16.msra.mxu0 0
    %900 = vmatprep.subr.bf16.mxu0 0
    %901 = vmatpush1.bf16.msra.mxu0 0
    %902 = vmatprep.subr.bf16.mxu0 0
    %903 = vmatpush1.bf16.msra.mxu0 0
    %904 = vmatprep.subr.bf16.mxu0 0
    %905 = vmatpush1.bf16.msra.mxu0 0
    %906 = vmatprep.subr.bf16.mxu0 0
    %907 = vmatpush1.bf16.msra.mxu0 0
    %908 = vmatprep.subr.bf16.mxu0 0
    %909 = vmatpush1.bf16.msra.mxu0 0
    %910 = vmatprep.subr.bf16.mxu0 0
    %911 = vmatpush1.bf16.msra.mxu0 0
    %912 = vmatprep.subr.bf16.mxu0 0
    %913 = vmatpush1.bf16.msra.mxu0 0
    %914 = vmatprep.subr.bf16.mxu0 0
    %915 = vmatpush1.bf16.msra.mxu0 0
    %916 = vmatprep.subr.bf16.mxu0 0
    %917 = vmatpush1.bf16.msra.mxu0 0
    %918 = vmatprep.subr.bf16.mxu0 0
    %919 = vmatpush1.bf16.msra.mxu0 0
    %920 = vmatprep.subr.bf16.mxu0 0
    %921 = vmatpush1.bf16.msra.mxu0 0
    %922 = vmatprep.mubr.bf16.mxu0 0
    %923 = vmatmul.mubr.bf16.gmra.mrb[0].mxu0 %v437
    %v924 = vpop.f32.mrb[0].mxu0
    %v925 = vadd.f32 0.0, %v924
    %v926 = vpop.f32.mrb[0].mxu0
    %v927 = vadd.f32 0.0, %v926
    %v928 = vpop.f32.mrb[0].mxu0
    %v929 = vpop.f32.mrb[0].mxu0
    %930 = vdwg.mxu0
    %931 = vmatprep.subr.bf16.mxu0 %v328
    %932 = vmatpush1.bf16.msra.mxu0 %v327
    %933 = vmatprep.subr.bf16.mxu0 %v361
    %934 = vmatpush1.bf16.msra.mxu0 %v360
    %935 = vmatprep.subr.bf16.mxu0 0
    %936 = vmatpush1.bf16.msra.mxu0 0
    %937 = vmatprep.subr.bf16.mxu0 0
    %938 = vmatpush1.bf16.msra.mxu0 0
    %939 = vmatprep.subr.bf16.mxu0 0
    %940 = vmatpush1.bf16.msra.mxu0 0
    %941 = vmatprep.subr.bf16.mxu0 0
    %942 = vmatpush1.bf16.msra.mxu0 0
    %943 = vmatprep.subr.bf16.mxu0 0
    %944 = vmatpush1.bf16.msra.mxu0 0
    %945 = vmatprep.subr.bf16.mxu0 0
    %946 = vmatpush1.bf16.msra.mxu0 0
    %947 = vmatprep.subr.bf16.mxu0 0
    %948 = vmatpush1.bf16.msra.mxu0 0
    %949 = vmatprep.subr.bf16.mxu0 0
    %950 = vmatpush1.bf16.msra.mxu0 0
    %951 = vmatprep.subr.bf16.mxu0 0
    %952 = vmatpush1.bf16.msra.mxu0 0
    %953 = vmatprep.subr.bf16.mxu0 0
    %954 = vmatpush1.bf16.msra.mxu0 0
    %955 = vmatprep.subr.bf16.mxu0 0
    %956 = vmatpush1.bf16.msra.mxu0 0
    %957 = vmatprep.subr.bf16.mxu0 0
    %958 = vmatpush1.bf16.msra.mxu0 0
    %959 = vmatprep.subr.bf16.mxu0 0
    %960 = vmatpush1.bf16.msra.mxu0 0
    %961 = vmatprep.subr.bf16.mxu0 0
    %962 = vmatpush1.bf16.msra.mxu0 0
    %963 = vmatprep.mubr.bf16.mxu0 0
    %964 = vmatmul.mubr.bf16.gmra.mrb[0].mxu0 %v437
    %v965 = vpop.f32.mrb[0].mxu0
    %v966 = vadd.f32 0.0, %v965
    %v967 = vpop.f32.mrb[0].mxu0
    %v968 = vadd.f32 0.0, %v967
    %v969 = vpop.f32.mrb[0].mxu0
    %v970 = vpop.f32.mrb[0].mxu0
    %971 = vdwg.mxu0
    %972 = vmatprep.subr.bf16.mxu0 %v330
    %973 = vmatpush1.bf16.msra.mxu0 %v329
    %974 = vmatprep.subr.bf16.mxu0 %v363
    %975 = vmatpush1.bf16.msra.mxu0 %v362
    %976 = vmatprep.subr.bf16.mxu0 0
    %977 = vmatpush1.bf16.msra.mxu0 0
    %978 = vmatprep.subr.bf16.mxu0 0
    %979 = vmatpush1.bf16.msra.mxu0 0
    %980 = vmatprep.subr.bf16.mxu0 0
    %981 = vmatpush1.bf16.msra.mxu0 0
    %982 = vmatprep.subr.bf16.mxu0 0
    %983 = vmatpush1.bf16.msra.mxu0 0
    %984 = vmatprep.subr.bf16.mxu0 0
    %985 = vmatpush1.bf16.msra.mxu0 0
    %986 = vmatprep.subr.bf16.mxu0 0
    %987 = vmatpush1.bf16.msra.mxu0 0
    %988 = vmatprep.subr.bf16.mxu0 0
    %989 = vmatpush1.bf16.msra.mxu0 0
    %990 = vmatprep.subr.bf16.mxu0 0
    %991 = vmatpush1.bf16.msra.mxu0 0
    %992 = vmatprep.subr.bf16.mxu0 0
    %993 = vmatpush1.bf16.msra.mxu0 0
    %994 = vmatprep.subr.bf16.mxu0 0
    %995 = vmatpush1.bf16.msra.mxu0 0
    %996 = vmatprep.subr.bf16.mxu0 0
    %997 = vmatpush1.bf16.msra.mxu0 0
    %998 = vmatprep.subr.bf16.mxu0 0
    %999 = vmatpush1.bf16.msra.mxu0 0
    %1000 = vmatprep.subr.bf16.mxu0 0
    %1001 = vmatpush1.bf16.msra.mxu0 0
    %1002 = vmatprep.subr.bf16.mxu0 0
    %1003 = vmatpush1.bf16.msra.mxu0 0
    %1004 = vmatprep.mubr.bf16.mxu0 0
    %1005 = vmatmul.mubr.bf16.gmra.mrb[0].mxu0 %v437
    %v1006 = vpop.f32.mrb[0].mxu0
    %v1007 = vadd.f32 0.0, %v1006
    %v1008 = vpop.f32.mrb[0].mxu0
    %v1009 = vadd.f32 0.0, %v1008
    %v1010 = vpop.f32.mrb[0].mxu0
    %v1011 = vpop.f32.mrb[0].mxu0
    %1012 = vdwg.mxu0
    %1013 = vmatprep.subr.bf16.mxu0 %v332
    %1014 = vmatpush1.bf16.msra.mxu0 %v331
    %1015 = vmatprep.subr.bf16.mxu0 %v365
    %1016 = vmatpush1.bf16.msra.mxu0 %v364
    %1017 = vmatprep.subr.bf16.mxu0 0
    %1018 = vmatpush1.bf16.msra.mxu0 0
    %1019 = vmatprep.subr.bf16.mxu0 0
    %1020 = vmatpush1.bf16.msra.mxu0 0
    %1021 = vmatprep.subr.bf16.mxu0 0
    %1022 = vmatpush1.bf16.msra.mxu0 0
    %1023 = vmatprep.subr.bf16.mxu0 0
    %1024 = vmatpush1.bf16.msra.mxu0 0
    %1025 = vmatprep.subr.bf16.mxu0 0
    %1026 = vmatpush1.bf16.msra.mxu0 0
    %1027 = vmatprep.subr.bf16.mxu0 0
    %1028 = vmatpush1.bf16.msra.mxu0 0
    %1029 = vmatprep.subr.bf16.mxu0 0
    %1030 = vmatpush1.bf16.msra.mxu0 0
    %1031 = vmatprep.subr.bf16.mxu0 0
    %1032 = vmatpush1.bf16.msra.mxu0 0
    %1033 = vmatprep.subr.bf16.mxu0 0
    %1034 = vmatpush1.bf16.msra.mxu0 0
    %1035 = vmatprep.subr.bf16.mxu0 0
    %1036 = vmatpush1.bf16.msra.mxu0 0
    %1037 = vmatprep.subr.bf16.mxu0 0
    %1038 = vmatpush1.bf16.msra.mxu0 0
    %1039 = vmatprep.subr.bf16.mxu0 0
    %1040 = vmatpush1.bf16.msra.mxu0 0
    %1041 = vmatprep.subr.bf16.mxu0 0
    %1042 = vmatpush1.bf16.msra.mxu0 0
    %1043 = vmatprep.subr.bf16.mxu0 0
    %1044 = vmatpush1.bf16.msra.mxu0 0
    %1045 = vmatprep.mubr.bf16.mxu0 0
    %1046 = vmatmul.mubr.bf16.gmra.mrb[0].mxu0 %v437
    %v1047 = vpop.f32.mrb[0].mxu0
    %v1048 = vadd.f32 0.0, %v1047
    %v1049 = vpop.f32.mrb[0].mxu0
    %v1050 = vadd.f32 0.0, %v1049
    %v1051 = vpop.f32.mrb[0].mxu0
    %v1052 = vpop.f32.mrb[0].mxu0
    %1053 = vdwg.mxu0
    %1054 = vmatprep.subr.bf16.mxu0 %v334
    %1055 = vmatpush1.bf16.msra.mxu0 %v333
    %1056 = vmatprep.subr.bf16.mxu0 %v367
    %1057 = vmatpush1.bf16.msra.mxu0 %v366
    %1058 = vmatprep.subr.bf16.mxu0 0
    %1059 = vmatpush1.bf16.msra.mxu0 0
    %1060 = vmatprep.subr.bf16.mxu0 0
    %1061 = vmatpush1.bf16.msra.mxu0 0
    %1062 = vmatprep.subr.bf16.mxu0 0
    %1063 = vmatpush1.bf16.msra.mxu0 0
    %1064 = vmatprep.subr.bf16.mxu0 0
    %1065 = vmatpush1.bf16.msra.mxu0 0
    %1066 = vmatprep.subr.bf16.mxu0 0
    %1067 = vmatpush1.bf16.msra.mxu0 0
    %1068 = vmatprep.subr.bf16.mxu0 0
    %1069 = vmatpush1.bf16.msra.mxu0 0
    %1070 = vmatprep.subr.bf16.mxu0 0
    %1071 = vmatpush1.bf16.msra.mxu0 0
    %1072 = vmatprep.subr.bf16.mxu0 0
    %1073 = vmatpush1.bf16.msra.mxu0 0
    %1074 = vmatprep.subr.bf16.mxu0 0
    %1075 = vmatpush1.bf16.msra.mxu0 0
    %1076 = vmatprep.subr.bf16.mxu0 0
    %1077 = vmatpush1.bf16.msra.mxu0 0
    %1078 = vmatprep.subr.bf16.mxu0 0
    %1079 = vmatpush1.bf16.msra.mxu0 0
    %1080 = vmatprep.subr.bf16.mxu0 0
    %1081 = vmatpush1.bf16.msra.mxu0 0
    %1082 = vmatprep.subr.bf16.mxu0 0
    %1083 = vmatpush1.bf16.msra.mxu0 0
    %1084 = vmatprep.subr.bf16.mxu0 0
    %1085 = vmatpush1.bf16.msra.mxu0 0
    %1086 = vmatprep.mubr.bf16.mxu0 0
    %1087 = vmatmul.mubr.bf16.gmra.mrb[0].mxu0 %v437
    %v1088 = vpop.f32.mrb[0].mxu0
    %v1089 = vadd.f32 0.0, %v1088
    %v1090 = vpop.f32.mrb[0].mxu0
    %v1091 = vadd.f32 0.0, %v1090
    %v1092 = vpop.f32.mrb[0].mxu0
    %v1093 = vpop.f32.mrb[0].mxu0
    %1094 = vdwg.mxu0
    %1095 = vmatprep.subr.bf16.mxu0 0
    %1096 = vmatpush1.bf16.msra.mxu0 %v335
    %1097 = vmatprep.subr.bf16.mxu0 0
    %1098 = vmatpush1.bf16.msra.mxu0 %v368
    %1099 = vmatprep.subr.bf16.mxu0 0
    %1100 = vmatpush1.bf16.msra.mxu0 0
    %1101 = vmatprep.subr.bf16.mxu0 0
    %1102 = vmatpush1.bf16.msra.mxu0 0
    %1103 = vmatprep.subr.bf16.mxu0 0
    %1104 = vmatpush1.bf16.msra.mxu0 0
    %1105 = vmatprep.subr.bf16.mxu0 0
    %1106 = vmatpush1.bf16.msra.mxu0 0
    %1107 = vmatprep.subr.bf16.mxu0 0
    %1108 = vmatpush1.bf16.msra.mxu0 0
    %1109 = vmatprep.subr.bf16.mxu0 0
    %1110 = vmatpush1.bf16.msra.mxu0 0
    %1111 = vmatprep.subr.bf16.mxu0 0
    %1112 = vmatpush1.bf16.msra.mxu0 0
    %1113 = vmatprep.subr.bf16.mxu0 0
    %1114 = vmatpush1.bf16.msra.mxu0 0
    %1115 = vmatprep.subr.bf16.mxu0 0
    %1116 = vmatpush1.bf16.msra.mxu0 0
    %1117 = vmatprep.subr.bf16.mxu0 0
    %1118 = vmatpush1.bf16.msra.mxu0 0
    %1119 = vmatprep.subr.bf16.mxu0 0
    %1120 = vmatpush1.bf16.msra.mxu0 0
    %1121 = vmatprep.subr.bf16.mxu0 0
    %1122 = vmatpush1.bf16.msra.mxu0 0
    %1123 = vmatprep.subr.bf16.mxu0 0
    %1124 = vmatpush1.bf16.msra.mxu0 0
    %1125 = vmatprep.subr.bf16.mxu0 0
    %1126 = vmatpush1.bf16.msra.mxu0 0
    %1127 = vmatprep.mubr.bf16.mxu0 0
    %1128 = vmatmul.mubr.bf16.gmra.mrb[0].mxu0 %v437
    %v1129 = vpop.f32.mrb[0].mxu0
    %v1130 = vadd.f32 0.0, %v1129
    %v1131 = vpop.f32.mrb[0].mxu0
    %v1132 = vpop.f32.mrb[0].mxu0
    %v1133 = vpop.f32.mrb[0].mxu0
    %1134 = vdwg.mxu0
    %v1135 = vmul.f32 %v474, %v476
    %v1136 = vmul.f32 %v474, %v515
    %v1137 = vmax.f32 %v1135, %v1136
    %v1138 = vmul.f32 %v474, %v517
    %v1139 = vmax.f32 %v1137, %v1138
    %v1140 = vmul.f32 %v474, %v556
    %v1141 = vmax.f32 %v1139, %v1140
    %v1142 = vmul.f32 %v474, %v558
    %v1143 = vmax.f32 %v1141, %v1142
    %v1144 = vmul.f32 %v474, %v597
    %v1145 = vmax.f32 %v1143, %v1144
    %v1146 = vmul.f32 %v474, %v599
    %v1147 = vmax.f32 %v1145, %v1146
    %v1148 = vmul.f32 %v474, %v638
    %v1149 = vmax.f32 %v1147, %v1148
    %v1150 = vmul.f32 %v474, %v640
    %v1151 = vmax.f32 %v1149, %v1150
    %v1152 = vmul.f32 %v474, %v679
    %v1153 = vmax.f32 %v1151, %v1152
    %v1154 = vmul.f32 %v474, %v681
    %v1155 = vmax.f32 %v1153, %v1154
    %v1156 = vmul.f32 %v474, %v720
    %v1157 = vmax.f32 %v1155, %v1156
    %v1158 = vmul.f32 %v474, %v722
    %v1159 = vmax.f32 %v1157, %v1158
    %v1160 = vmul.f32 %v474, %v761
    %v1161 = vmax.f32 %v1159, %v1160
    %v1162 = vmul.f32 %v474, %v763
    %v1163 = vmax.f32 %v1161, %v1162
    %v1164 = vmul.f32 %v474, %v802
    %v1165 = vmax.f32 %v1163, %v1164
    %v1166 = vsub.f32 %v1135, %v1165
    %v1167 = vmul.f32 %v1166, 1.442695
    %v1168 = vpow.pop %v1167
    %v1169 = vadd.f32 %v1168, 0.0
    %v1170 = vmul.f32 %v1168, %v804
    %v1171 = vadd.f32 %v1170, 0.0
    %v1172 = vsub.f32 %v1136, %v1165
    %v1173 = vmul.f32 %v1172, 1.442695
    %v1174 = vpow.pop %v1173
    %v1175 = vadd.f32 %v1169, %v1174
    %v1176 = vmul.f32 %v1174, %v843
    %v1177 = vadd.f32 %v1171, %v1176
    %v1178 = vsub.f32 %v1138, %v1165
    %v1179 = vmul.f32 %v1178, 1.442695
    %v1180 = vpow.pop %v1179
    %v1181 = vadd.f32 %v1175, %v1180
    %v1182 = vmul.f32 %v1180, %v845
    %v1183 = vadd.f32 %v1177, %v1182
    %v1184 = vsub.f32 %v1140, %v1165
    %v1185 = vmul.f32 %v1184, 1.442695
    %v1186 = vpow.pop %v1185
    %v1187 = vadd.f32 %v1181, %v1186
    %v1188 = vmul.f32 %v1186, %v884
    %v1189 = vadd.f32 %v1183, %v1188
    %v1190 = vsub.f32 %v1142, %v1165
    %v1191 = vmul.f32 %v1190, 1.442695
    %v1192 = vpow.pop %v1191
    %v1193 = vadd.f32 %v1187, %v1192
    %v1194 = vmul.f32 %v1192, %v886
    %v1195 = vadd.f32 %v1189, %v1194
    %v1196 = vsub.f32 %v1144, %v1165
    %v1197 = vmul.f32 %v1196, 1.442695
    %v1198 = vpow.pop %v1197
    %v1199 = vadd.f32 %v1193, %v1198
    %v1200 = vmul.f32 %v1198, %v925
    %v1201 = vadd.f32 %v1195, %v1200
    %v1202 = vsub.f32 %v1146, %v1165
    %v1203 = vmul.f32 %v1202, 1.442695
    %v1204 = vpow.pop %v1203
    %v1205 = vadd.f32 %v1199, %v1204
    %v1206 = vmul.f32 %v1204, %v927
    %v1207 = vadd.f32 %v1201, %v1206
    %v1208 = vsub.f32 %v1148, %v1165
    %v1209 = vmul.f32 %v1208, 1.442695
    %v1210 = vpow.pop %v1209
    %v1211 = vadd.f32 %v1205, %v1210
    %v1212 = vmul.f32 %v1210, %v966
    %v1213 = vadd.f32 %v1207, %v1212
    %v1214 = vsub.f32 %v1150, %v1165
    %v1215 = vmul.f32 %v1214, 1.442695
    %v1216 = vpow.pop %v1215
    %v1217 = vadd.f32 %v1211, %v1216
    %v1218 = vmul.f32 %v1216, %v968
    %v1219 = vadd.f32 %v1213, %v1218
    %v1220 = vsub.f32 %v1152, %v1165
    %v1221 = vmul.f32 %v1220, 1.442695
    %v1222 = vpow.pop %v1221
    %v1223 = vadd.f32 %v1217, %v1222
    %v1224 = vmul.f32 %v1222, %v1007
    %v1225 = vadd.f32 %v1219, %v1224
    %v1226 = vsub.f32 %v1154, %v1165
    %v1227 = vmul.f32 %v1226, 1.442695
    %v1228 = vpow.pop %v1227
    %v1229 = vadd.f32 %v1223, %v1228
    %v1230 = vmul.f32 %v1228, %v1009
    %v1231 = vadd.f32 %v1225, %v1230
    %v1232 = vsub.f32 %v1156, %v1165
    %v1233 = vmul.f32 %v1232, 1.442695
    %v1234 = vpow.pop %v1233
    %v1235 = vadd.f32 %v1229, %v1234
    %v1236 = vmul.f32 %v1234, %v1048
    %v1237 = vadd.f32 %v1231, %v1236
    %v1238 = vsub.f32 %v1158, %v1165
    %v1239 = vmul.f32 %v1238, 1.442695
    %v1240 = vpow.pop %v1239
    %v1241 = vadd.f32 %v1235, %v1240
    %v1242 = vmul.f32 %v1240, %v1050
    %v1243 = vadd.f32 %v1237, %v1242
    %v1244 = vsub.f32 %v1160, %v1165
    %v1245 = vmul.f32 %v1244, 1.442695
    %v1246 = vpow.pop %v1245
    %v1247 = vadd.f32 %v1241, %v1246
    %v1248 = vmul.f32 %v1246, %v1089
    %v1249 = vadd.f32 %v1243, %v1248
    %v1250 = vsub.f32 %v1162, %v1165
    %v1251 = vmul.f32 %v1250, 1.442695
    %v1252 = vpow.pop %v1251
    %v1253 = vadd.f32 %v1247, %v1252
    %v1254 = vmul.f32 %v1252, %v1091
    %v1255 = vadd.f32 %v1249, %v1254
    %v1256 = vsub.f32 %v1164, %v1165
    %v1257 = vmul.f32 %v1256, 1.442695
    %v1258 = vpow.pop %v1257
    %v1259 = vadd.f32 %v1253, %v1258
    %v1260 = vmul.f32 %v1258, %v1130
    %v1261 = vadd.f32 %v1255, %v1260
    %v1262 = vrcp.pop %v1259
    %v1263 = vmul.f32 %v1261, %v1262
    %v1264 = vpack.c.bf16 %v1263, %v1263
    %v1265 = vld [vmem:[%s2] sm:$0xf]
    %v1266 = vld [vmem:[%s2 + $0x4] sm:$0xf]
    %v1267 = vld [vmem:[%s2 + $0x8] sm:$0xf]
    %v1268 = vld [vmem:[%s2 + $0xc] sm:$0xf]
    %v1269 = vld [vmem:[%s2 + $0x10] sm:$0xf]
    %v1270 = vld [vmem:[%s2 + $0x14] sm:$0xf]
    %v1271 = vld [vmem:[%s2 + $0x18] sm:$0xf]
    %v1272 = vld [vmem:[%s2 + $0x1c] sm:$0xf]
    %v1273 = vld [vmem:[%s2 + $0x20] sm:$0xf]
    %v1274 = vld [vmem:[%s2 + $0x24] sm:$0xf]
    %v1275 = vld [vmem:[%s2 + $0x28] sm:$0xf]
    %v1276 = vld [vmem:[%s2 + $0x2c] sm:$0xf]
    %v1277 = vld [vmem:[%s2 + $0x30] sm:$0xf]
    %v1278 = vld [vmem:[%s2 + $0x34] sm:$0xf]
    %v1279 = vld [vmem:[%s2 + $0x38] sm:$0xf]
    %v1280 = vld [vmem:[%s2 + $0x3c] sm:$0xf]
    %v1281 = vld [vmem:[%s3] sm:$0x1]
    %v1283 = vlaneseq
    %v1284 = vshrl.u32 %v1283, 7
    %v1285 = vsub.s32 0, %v1284
    %v1286 = vrot.slane %v1281, %v1285
    %v1304 = vunpack.c.l.b16 %v1265
    %v1305 = vunpack.c.l.b16 %v1266
    %v1306 = vunpack.c.l.b16 %v1267
    %v1307 = vunpack.c.l.b16 %v1268
    %v1308 = vunpack.c.l.b16 %v1269
    %v1309 = vunpack.c.l.b16 %v1270
    %v1310 = vunpack.c.l.b16 %v1271
    %v1311 = vunpack.c.l.b16 %v1272
    %v1312 = vunpack.c.l.b16 %v1273
    %v1313 = vunpack.c.l.b16 %v1274
    %v1314 = vunpack.c.l.b16 %v1275
    %v1315 = vunpack.c.l.b16 %v1276
    %v1316 = vunpack.c.l.b16 %v1277
    %v1317 = vunpack.c.l.b16 %v1278
    %v1318 = vunpack.c.l.b16 %v1279
    %v1319 = vunpack.c.l.b16 %v1280
    %v1320 = vpack.c.b16 %v1305, %v1304
    %v1321 = vpack.c.b16 %v1307, %v1306
    %v1322 = vpack.c.b16 %v1309, %v1308
    %v1323 = vpack.c.b16 %v1311, %v1310
    %v1324 = vpack.c.b16 %v1313, %v1312
    %v1325 = vpack.c.b16 %v1315, %v1314
    %v1326 = vpack.c.b16 %v1317, %v1316
    %v1327 = vpack.c.b16 %v1319, %v1318
    %1336 = vmatprep.subr.bf16.mxu0 0
    %1337 = vmatpush1.bf16.msra.mxu0 %v1320
    %1338 = vmatprep.subr.bf16.mxu0 0
    %1339 = vmatpush1.bf16.msra.mxu0 %v1321
    %1340 = vmatprep.subr.bf16.mxu0 0
    %1341 = vmatpush1.bf16.msra.mxu0 %v1322
    %1342 = vmatprep.subr.bf16.mxu0 0
    %1343 = vmatpush1.bf16.msra.mxu0 %v1323
    %1344 = vmatprep.subr.bf16.mxu0 0
    %1345 = vmatpush1.bf16.msra.mxu0 %v1324
    %1346 = vmatprep.subr.bf16.mxu0 0
    %1347 = vmatpush1.bf16.msra.mxu0 %v1325
    %1348 = vmatprep.subr.bf16.mxu0 0
    %1349 = vmatpush1.bf16.msra.mxu0 %v1326
    %1350 = vmatprep.subr.bf16.mxu0 0
    %1351 = vmatpush1.bf16.msra.mxu0 %v1327
    %1352 = vmatprep.subr.bf16.mxu0 0
    %1353 = vmatpush1.bf16.msra.mxu0 0
    %1354 = vmatprep.subr.bf16.mxu0 0
    %1355 = vmatpush1.bf16.msra.mxu0 0
    %1356 = vmatprep.subr.bf16.mxu0 0
    %1357 = vmatpush1.bf16.msra.mxu0 0
    %1358 = vmatprep.subr.bf16.mxu0 0
    %1359 = vmatpush1.bf16.msra.mxu0 0
    %1360 = vmatprep.subr.bf16.mxu0 0
    %1361 = vmatpush1.bf16.msra.mxu0 0
    %1362 = vmatprep.subr.bf16.mxu0 0
    %1363 = vmatpush1.bf16.msra.mxu0 0
    %1364 = vmatprep.subr.bf16.mxu0 0
    %1365 = vmatpush1.bf16.msra.mxu0 0
    %1366 = vmatprep.subr.bf16.mxu0 0
    %1367 = vmatpush1.bf16.msra.mxu0 0
    %1368 = vmatprep.mubr.bf16.mxu0 0
    %1369 = vmatmul.mubr.bf16.gmra.mrb[0].mxu0 %v1264
    %v1370 = vpop.f32.mrb[0].mxu0
    %v1371 = vadd.f32 %v1286, %v1370
    %v1372 = vpop.f32.mrb[0].mxu0
    %v1373 = vpop.f32.mrb[0].mxu0
    %v1374 = vpop.f32.mrb[0].mxu0
    %1375 = vdwg.mxu0
    %v1376 = vtanh.pop %v1371
    %vm1377 = vcmask 130048
    %1378 = vst.msk [vmem:[#allocation5] sm:$0xff] %vm1377, %v1376
    // Predicated region
    $region22: #{tpu_custom_call.1} parent=1 // pred_check
      _
    $region23: #{tpu_custom_call.1} parent=1 // pred_check_branch
      %1380 = sbr.rel (0) target = $region25
    $region24: #{tpu_custom_call.1} parent=1 // pred_region
      %s1382 = ssub.s32 128, 128
      %1383 = vsyncadd [#allocation4], %s1382
      %s1385 = sshll.u32 [#allocation5], 4
      %s1386 = int_to_ptr.vmem [resolvable:$true] %s1385
      %1388 = dma.vmem_to_hbm [thread:$0]  %s1386, 128, %s4, [#allocation4]
    $region25: #{tpu_custom_call.1} parent=1 // pred_fallthru
      _
    // Predicated region
    $region26: #{tpu_custom_call.1} parent=1 // pred_check
      _
    $region27: #{tpu_custom_call.1} parent=1 // pred_check_branch
      %1390 = sbr.rel (0) target = $region29
    $region28: #{tpu_custom_call.1} parent=1 // pred_region
      %1391 = dma.done [#allocation4], 128
    $region29: #{tpu_custom_call.1} parent=1 // pred_fallthru
      _
    %1392 = vsyncpa [#allocation3], 1
    %1393 = vsyncpa [#allocation4], 1

</llo_original>
